<compile_context>
chip_gen: v6e
topology: v6e:2x2x1
jax: 0.10.0
libtpu: 0.0.40
codegen_flags: <defaults>
</compile_context>

<pallas_src>
import jax
import jax.numpy as jnp
from jax.experimental import pallas as pl
from jax.experimental.pallas import tpu as pltpu

K = 5  # kernel size of all three convolutions


# ---------------------------------------------------------------------------
# Weight / constant preparation (tiny, weights-only, folded into the jit)
# ---------------------------------------------------------------------------

def _band_matrices(w, w_in, w_out):
    """Rearrange conv weights (Cout, Cin, K, K) into K banded matrices.

    M[kh][ci*w_in + wo + kw, co*w_out + wo] = w[co, ci, kh, kw]
    so that (input rows shifted by kh) @ M[kh], summed over kh, performs the
    full convolution (contraction over Cin and kw) as plain 2-D matmuls.
    """
    c_out, c_in, k, _ = w.shape
    co, ci, wo, kw = jnp.meshgrid(
        jnp.arange(c_out), jnp.arange(c_in), jnp.arange(w_out), jnp.arange(k),
        indexing="ij")
    rows = ci * w_in + wo + kw
    cols = co * w_out + wo
    m = jnp.zeros((k, c_in * w_in, c_out * w_out), jnp.float32)
    for kh in range(k):
        m = m.at[kh, rows, cols].set(w[:, :, kh, :][co, ci, kw])
    return m


def _pool_rows(h, n):
    """(h//2*n, h*n) left-multiply matrix averaging row pairs (row = h*n + b)."""
    hh = h // 2
    r = jnp.arange(hh * n)
    c = jnp.arange(h * n)
    same_batch = (r[:, None] % n) == (c[None, :] % n)
    same_block = ((c[None, :] // n) // 2) == (r[:, None] // n)
    return jnp.where(same_batch & same_block, 0.5, 0.0).astype(jnp.float32)


def _pool_cols(w, ch):
    """(ch*w, ch*(w//2)) right-multiply matrix averaging col pairs (col = c*w + x)."""
    wh = w // 2
    r = jnp.arange(ch * w)
    c = jnp.arange(ch * wh)
    same_ch = (r[:, None] // w) == (c[None, :] // wh)
    same_block = ((r[:, None] % w) // 2) == (c[None, :] % wh)
    return jnp.where(same_ch & same_block, 0.5, 0.0).astype(jnp.float32)


# ---------------------------------------------------------------------------
# The fused forward pass
# ---------------------------------------------------------------------------

def net_forward(params, x):
    n = x.shape[0]
    f32, bf16 = jnp.float32, jnp.bfloat16

    # Layer geometry (28x28 input is required by x.view(-1, 12) in the spec).
    hp = 32                    # conv1 input, pre-padded by 2 on each side
    h1, h1p = 28, 14           # conv1 out / pool1 out
    h2, h2p = 10, 5            # conv2 out / pool2 out
    h3 = 1                     # conv3 out
    c1, c2, c3 = 6, 16, 12

    # --- weight prep (band matrices, pooling matrices, bias rows) ---
    m1 = _band_matrices(params["w1"], hp, h1).astype(bf16)     # (5, 32, 168)
    m2 = _band_matrices(params["w2"], h1p, h2).astype(bf16)    # (5, 84, 160)
    m3 = _band_matrices(params["w3"], h2p, h3).astype(bf16)    # (5, 80, 12)
    b1r = jnp.repeat(params["b1"], h1)[None, :].astype(f32)    # (1, 168)
    b2r = jnp.repeat(params["b2"], h2)[None, :].astype(f32)    # (1, 160)
    b3r = jnp.repeat(params["b3"], h3)[None, :].astype(f32)    # (1, 12)
    ph1 = _pool_rows(h1, n).astype(bf16)                       # (14n, 28n)
    pw1 = _pool_cols(h1, c1).astype(bf16)                      # (168, 84)
    ph2 = _pool_rows(h2, n).astype(bf16)                       # (5n, 10n)
    pw2 = _pool_cols(h2, c2).astype(bf16)                      # (160, 80)
    wl = params["wl1"].T.astype(bf16)                          # (12, 10)
    blr = params["bl1"][None, :].astype(f32)                   # (1, 10)

    # --- input layout: (N,1,28,28) -> zero-pad 2 -> (hp*N, hp), row = h*N+n ---
    xpad = jnp.pad(x[:, 0].astype(f32), ((0, 0), (2, 2), (2, 2)))   # (N,32,32)
    x0 = jnp.transpose(xpad, (1, 0, 2)).reshape(hp * n, hp)         # (32N, 32)

    def kernel(x0_ref, m1_ref, b1_ref, ph1_ref, pw1_ref,
               m2_ref, b2_ref, ph2_ref, pw2_ref,
               m3_ref, b3_ref, wl_ref, bl_ref,
               o_ref, a1_ref, a2_ref):
        def mm(a, b):  # bf16 MXU matmul, f32 accumulation
            return jnp.dot(a.astype(bf16), b.astype(bf16),
                           preferred_element_type=f32)

        # ---- conv1 (1->6, k5, input pre-padded): (32N,32) -> (28N, 6*28) ----
        acc = jnp.zeros((h1 * n, c1 * h1), f32)
        for kh in range(K):
            acc += mm(x0_ref[pl.ds(kh * n, h1 * n), :], m1_ref[kh])
        z1 = acc + b1_ref[...]
        # avg_pool 2x2 (two tiny matmuls) then sigmoid (exp + approx recip)
        p1 = mm(ph1_ref[...], mm(z1, pw1_ref[...]))            # (14N, 6*14)
        a1_ref[...] = pl.reciprocal(1.0 + jnp.exp(-p1), approx=True)

        # ---- conv2 (6->16, k5): (14N, 84) -> (10N, 16*10) ----
        acc = jnp.zeros((h2 * n, c2 * h2), f32)
        for kh in range(K):
            acc += mm(a1_ref[pl.ds(kh * n, h2 * n), :], m2_ref[kh])
        z2 = acc + b2_ref[...]
        a2_ref[...] = mm(ph2_ref[...], mm(z2, pw2_ref[...]))   # (5N, 16*5)

        # ---- conv3 (16->12, k5): (5N, 80) -> (N, 12) == x.view(-1, 12) ----
        acc = jnp.zeros((h3 * n, c3 * h3), f32)
        for kh in range(K):
            acc += mm(a2_ref[pl.ds(kh * n, h3 * n), :], m3_ref[kh])
        z3 = acc + b3_ref[...]

        # ---- linear1 + log_softmax(dim=-1) ----
        logits = mm(z3, wl_ref[...]) + bl_ref[...]
        zmax = jnp.max(logits, axis=-1, keepdims=True)
        s = logits - zmax
        lse = jnp.log(jnp.sum(jnp.exp(s), axis=-1, keepdims=True))
        o_ref[...] = s - lse

    def full(a):
        nd = a.ndim
        return pl.BlockSpec(a.shape, lambda i, _nd=nd: (0,) * _nd)

    args = (x0, m1, b1r, ph1, pw1, m2, b2r, ph2, pw2, m3, b3r, wl, blr)
    return pl.pallas_call(
        kernel,
        grid=(1,),
        in_specs=[full(a) for a in args],
        out_specs=pl.BlockSpec((n, 10), lambda i: (0, 0)),
        out_shape=jax.ShapeDtypeStruct((n, 10), f32),
        scratch_shapes=[
            pltpu.VMEM((h1p * n, c1 * h1p), f32),   # pooled+sigmoid conv1 acts
            pltpu.VMEM((h2p * n, c2 * h2p), f32),   # pooled conv2 acts
        ],
        compiler_params=pltpu.CompilerParams(
            dimension_semantics=("arbitrary",),
            vmem_limit_bytes=32 * 1024 * 1024,
        ),
    )(*args)


# ---------------------------------------------------------------------------
# Parameters + plain-JAX reference (for a correctness check)
# ---------------------------------------------------------------------------

def init_params(key):
    ks = jax.random.split(key, 10)

    def u(k, shape, fan_in):
        bound = 1.0 / jnp.sqrt(float(fan_in))
        return jax.random.uniform(k, shape, jnp.float32, -bound, bound)

    return dict(
        w1=u(ks[0], (6, 1, 5, 5), 1 * 25),    b1=u(ks[1], (6,), 1 * 25),
        w2=u(ks[2], (16, 6, 5, 5), 6 * 25),   b2=u(ks[3], (16,), 6 * 25),
        w3=u(ks[4], (12, 16, 5, 5), 16 * 25), b3=u(ks[5], (12,), 16 * 25),
        wl1=u(ks[6], (10, 12), 12),           bl1=u(ks[7], (10,), 12),
        # linear2 (50 -> 10) exists in __init__ but is unused in forward().
        wl2=u(ks[8], (10, 50), 50),           bl2=u(ks[9], (10,), 50),
    )


def net_reference(params, x):
    dn = ("NCHW", "OIHW", "NCHW")

    def conv(v, w, b, pad):
        out = jax.lax.conv_general_dilated(
            v, w, window_strides=(1, 1),
            padding=[(pad, pad), (pad, pad)], dimension_numbers=dn)
        return out + b[None, :, None, None]

    def pool(v):
        bn, ch, hh, ww = v.shape
        return v.reshape(bn, ch, hh // 2, 2, ww // 2, 2).mean(axis=(3, 5))

    v = conv(x, params["w1"], params["b1"], 2)
    v = jax.nn.sigmoid(pool(v))
    v = conv(v, params["w2"], params["b2"], 0)
    v = pool(v)
    v = conv(v, params["w3"], params["b3"], 0)
    v = v.reshape(-1, 12)
    logits = v @ params["wl1"].T + params["bl1"]
    return jax.nn.log_softmax(logits, axis=-1)


if __name__ == "__main__":
    key = jax.random.PRNGKey(0)
    kx, kp = jax.random.split(key)
    x = jax.random.normal(kx, (2, 1, 28, 28), jnp.float32)
    params = init_params(kp)

    out = jax.block_until_ready(jax.jit(net_forward)(params, x))
    ref = jax.block_until_ready(jax.jit(net_reference)(params, x))

    assert out.shape == (2, 10)
    # rows of a log_softmax must exp-sum to 1
    assert bool(jnp.allclose(jnp.exp(out).sum(axis=1), 1.0, atol=1e-3))
    # matches the plain-JAX reference (bf16 matmuls => loose-ish tolerance)
    assert bool(jnp.allclose(out, ref, atol=3e-2)), (out, ref)
    print("KERNEL_OK")
</pallas_src>

<mosaic_0001>
module attributes {stable_mosaic.version = 11 : i64} {
  func.func @kernel(%arg0: i32, %arg1: memref<64x32xf32, #tpu.memory_space<vmem>>, %arg2: memref<5x32x168xbf16, #tpu.memory_space<vmem>>, %arg3: memref<1x168xf32, #tpu.memory_space<vmem>>, %arg4: memref<28x56xbf16, #tpu.memory_space<vmem>>, %arg5: memref<168x84xbf16, #tpu.memory_space<vmem>>, %arg6: memref<5x84x160xbf16, #tpu.memory_space<vmem>>, %arg7: memref<1x160xf32, #tpu.memory_space<vmem>>, %arg8: memref<10x20xbf16, #tpu.memory_space<vmem>>, %arg9: memref<160x80xbf16, #tpu.memory_space<vmem>>, %arg10: memref<5x80x12xbf16, #tpu.memory_space<vmem>>, %arg11: memref<1x12xf32, #tpu.memory_space<vmem>>, %arg12: memref<12x10xbf16, #tpu.memory_space<vmem>>, %arg13: memref<1x10xf32, #tpu.memory_space<vmem>>, %arg14: memref<2x10xf32, #tpu.memory_space<vmem>>, %arg15: memref<28x84xf32, #tpu.memory_space<vmem>>, %arg16: memref<10x80xf32, #tpu.memory_space<vmem>>) attributes {dimension_semantics = [#tpu.dimension_semantics<arbitrary>], iteration_bounds = array<i64: 1>, scalar_prefetch = 0 : i64, scratch_operands = 2 : i64, tpu.core_type = #tpu.core_type<tc>, window_params = [{pipeline_mode = #tpu.pipeline_mode<synchronous>, transform_indices = @transform_0, window_bounds = array<i64: 64, 32>}, {pipeline_mode = #tpu.pipeline_mode<synchronous>, transform_indices = @transform_1, window_bounds = array<i64: 5, 32, 168>}, {pipeline_mode = #tpu.pipeline_mode<synchronous>, transform_indices = @transform_2, window_bounds = array<i64: 1, 168>}, {pipeline_mode = #tpu.pipeline_mode<synchronous>, transform_indices = @transform_3, window_bounds = array<i64: 28, 56>}, {pipeline_mode = #tpu.pipeline_mode<synchronous>, transform_indices = @transform_4, window_bounds = array<i64: 168, 84>}, {pipeline_mode = #tpu.pipeline_mode<synchronous>, transform_indices = @transform_5, window_bounds = array<i64: 5, 84, 160>}, {pipeline_mode = #tpu.pipeline_mode<synchronous>, transform_indices = @transform_6, window_bounds = array<i64: 1, 160>}, {pipeline_mode = #tpu.pipeline_mode<synchronous>, transform_indices = @transform_7, window_bounds = array<i64: 10, 20>}, {pipeline_mode = #tpu.pipeline_mode<synchronous>, transform_indices = @transform_8, window_bounds = array<i64: 160, 80>}, {pipeline_mode = #tpu.pipeline_mode<synchronous>, transform_indices = @transform_9, window_bounds = array<i64: 5, 80, 12>}, {pipeline_mode = #tpu.pipeline_mode<synchronous>, transform_indices = @transform_10, window_bounds = array<i64: 1, 12>}, {pipeline_mode = #tpu.pipeline_mode<synchronous>, transform_indices = @transform_11, window_bounds = array<i64: 12, 10>}, {pipeline_mode = #tpu.pipeline_mode<synchronous>, transform_indices = @transform_12, window_bounds = array<i64: 1, 10>}, {pipeline_mode = #tpu.pipeline_mode<synchronous>, transform_indices = @transform_13, window_bounds = array<i64: 2, 10>}]} {
    %cst = arith.constant 0.000000e+00 : f32
    %0 = vector.broadcast %cst : f32 to vector<56x168xf32>
    %c0 = arith.constant 0 : index
    %c0_0 = arith.constant 0 : index
    %1 = vector.load %arg1[%c0, %c0_0] : memref<64x32xf32, #tpu.memory_space<vmem>>, vector<56x32xf32>
    %c0_1 = arith.constant 0 : index
    %c0_2 = arith.constant 0 : index
    %c0_3 = arith.constant 0 : index
    %2 = vector.load %arg2[%c0_1, %c0_2, %c0_3] : memref<5x32x168xbf16, #tpu.memory_space<vmem>>, vector<1x32x168xbf16>
    %3 = vector.shape_cast %2 : vector<1x32x168xbf16> to vector<32x168xbf16>
    %4 = arith.truncf %1 : vector<56x32xf32> to vector<56x32xbf16>
    %cst_4 = arith.constant dense<0.000000e+00> : vector<56x168xf32>
    %5 = tpu.matmul %4, %3, %cst_4 {dimension_numbers = #tpu.dot_dimension_numbers<[1], [0], [0], [1], [0, 0, 1, 1], [], []>} : vector<56x32xbf16>, vector<32x168xbf16>, vector<56x168xf32> -> vector<56x168xf32>
    %6 = arith.addf %0, %5 : vector<56x168xf32>
    %c2 = arith.constant 2 : index
    %c0_5 = arith.constant 0 : index
    %7 = vector.load %arg1[%c2, %c0_5] : memref<64x32xf32, #tpu.memory_space<vmem>>, vector<56x32xf32>
    %c1 = arith.constant 1 : index
    %c0_6 = arith.constant 0 : index
    %c0_7 = arith.constant 0 : index
    %8 = vector.load %arg2[%c1, %c0_6, %c0_7] : memref<5x32x168xbf16, #tpu.memory_space<vmem>>, vector<1x32x168xbf16>
    %9 = vector.shape_cast %8 : vector<1x32x168xbf16> to vector<32x168xbf16>
    %10 = arith.truncf %7 : vector<56x32xf32> to vector<56x32xbf16>
    %cst_8 = arith.constant dense<0.000000e+00> : vector<56x168xf32>
    %11 = tpu.matmul %10, %9, %cst_8 {dimension_numbers = #tpu.dot_dimension_numbers<[1], [0], [0], [1], [0, 0, 1, 1], [], []>} : vector<56x32xbf16>, vector<32x168xbf16>, vector<56x168xf32> -> vector<56x168xf32>
    %12 = arith.addf %6, %11 : vector<56x168xf32>
    %c4 = arith.constant 4 : index
    %c0_9 = arith.constant 0 : index
    %13 = vector.load %arg1[%c4, %c0_9] : memref<64x32xf32, #tpu.memory_space<vmem>>, vector<56x32xf32>
    %c2_10 = arith.constant 2 : index
    %c0_11 = arith.constant 0 : index
    %c0_12 = arith.constant 0 : index
    %14 = vector.load %arg2[%c2_10, %c0_11, %c0_12] : memref<5x32x168xbf16, #tpu.memory_space<vmem>>, vector<1x32x168xbf16>
    %15 = vector.shape_cast %14 : vector<1x32x168xbf16> to vector<32x168xbf16>
    %16 = arith.truncf %13 : vector<56x32xf32> to vector<56x32xbf16>
    %cst_13 = arith.constant dense<0.000000e+00> : vector<56x168xf32>
    %17 = tpu.matmul %16, %15, %cst_13 {dimension_numbers = #tpu.dot_dimension_numbers<[1], [0], [0], [1], [0, 0, 1, 1], [], []>} : vector<56x32xbf16>, vector<32x168xbf16>, vector<56x168xf32> -> vector<56x168xf32>
    %18 = arith.addf %12, %17 : vector<56x168xf32>
    %c6 = arith.constant 6 : index
    %c0_14 = arith.constant 0 : index
    %19 = vector.load %arg1[%c6, %c0_14] : memref<64x32xf32, #tpu.memory_space<vmem>>, vector<56x32xf32>
    %c3 = arith.constant 3 : index
    %c0_15 = arith.constant 0 : index
    %c0_16 = arith.constant 0 : index
    %20 = vector.load %arg2[%c3, %c0_15, %c0_16] : memref<5x32x168xbf16, #tpu.memory_space<vmem>>, vector<1x32x168xbf16>
    %21 = vector.shape_cast %20 : vector<1x32x168xbf16> to vector<32x168xbf16>
    %22 = arith.truncf %19 : vector<56x32xf32> to vector<56x32xbf16>
    %cst_17 = arith.constant dense<0.000000e+00> : vector<56x168xf32>
    %23 = tpu.matmul %22, %21, %cst_17 {dimension_numbers = #tpu.dot_dimension_numbers<[1], [0], [0], [1], [0, 0, 1, 1], [], []>} : vector<56x32xbf16>, vector<32x168xbf16>, vector<56x168xf32> -> vector<56x168xf32>
    %24 = arith.addf %18, %23 : vector<56x168xf32>
    %c8 = arith.constant 8 : index
    %c0_18 = arith.constant 0 : index
    %25 = vector.load %arg1[%c8, %c0_18] : memref<64x32xf32, #tpu.memory_space<vmem>>, vector<56x32xf32>
    %c4_19 = arith.constant 4 : index
    %c0_20 = arith.constant 0 : index
    %c0_21 = arith.constant 0 : index
    %26 = vector.load %arg2[%c4_19, %c0_20, %c0_21] : memref<5x32x168xbf16, #tpu.memory_space<vmem>>, vector<1x32x168xbf16>
    %27 = vector.shape_cast %26 : vector<1x32x168xbf16> to vector<32x168xbf16>
    %28 = arith.truncf %25 : vector<56x32xf32> to vector<56x32xbf16>
    %cst_22 = arith.constant dense<0.000000e+00> : vector<56x168xf32>
    %29 = tpu.matmul %28, %27, %cst_22 {dimension_numbers = #tpu.dot_dimension_numbers<[1], [0], [0], [1], [0, 0, 1, 1], [], []>} : vector<56x32xbf16>, vector<32x168xbf16>, vector<56x168xf32> -> vector<56x168xf32>
    %30 = arith.addf %24, %29 : vector<56x168xf32>
    %c0_23 = arith.constant 0 : index
    %c0_24 = arith.constant 0 : index
    %31 = vector.load %arg3[%c0_23, %c0_24] : memref<1x168xf32, #tpu.memory_space<vmem>>, vector<1x168xf32>
    %32 = vector.broadcast %31 : vector<1x168xf32> to vector<56x168xf32>
    %33 = arith.addf %30, %32 : vector<56x168xf32>
    %c0_25 = arith.constant 0 : index
    %c0_26 = arith.constant 0 : index
    %34 = vector.load %arg4[%c0_25, %c0_26] : memref<28x56xbf16, #tpu.memory_space<vmem>>, vector<28x56xbf16>
    %c0_27 = arith.constant 0 : index
    %c0_28 = arith.constant 0 : index
    %35 = vector.load %arg5[%c0_27, %c0_28] : memref<168x84xbf16, #tpu.memory_space<vmem>>, vector<168x84xbf16>
    %36 = arith.truncf %33 : vector<56x168xf32> to vector<56x168xbf16>
    %cst_29 = arith.constant dense<0.000000e+00> : vector<56x84xf32>
    %37 = tpu.matmul %36, %35, %cst_29 {dimension_numbers = #tpu.dot_dimension_numbers<[1], [0], [0], [1], [0, 0, 1, 1], [], []>} : vector<56x168xbf16>, vector<168x84xbf16>, vector<56x84xf32> -> vector<56x84xf32>
    %38 = arith.truncf %37 : vector<56x84xf32> to vector<56x84xbf16>
    %cst_30 = arith.constant dense<0.000000e+00> : vector<28x84xf32>
    %39 = tpu.matmul %34, %38, %cst_30 {dimension_numbers = #tpu.dot_dimension_numbers<[1], [0], [0], [1], [0, 0, 1, 1], [], []>} : vector<28x56xbf16>, vector<56x84xbf16>, vector<28x84xf32> -> vector<28x84xf32>
    %cst_31 = arith.constant 0.000000e+00 : f32
    %40 = vector.broadcast %cst_31 : f32 to vector<28x84xf32>
    %41 = arith.subf %40, %39 : vector<28x84xf32>
    %42 = math.exp %41 : vector<28x84xf32>
    %cst_32 = arith.constant 1.000000e+00 : f32
    %43 = vector.broadcast %cst_32 : f32 to vector<28x84xf32>
    %44 = arith.addf %43, %42 : vector<28x84xf32>
    %45 = tpu.reciprocal %44 {approx = true} : vector<28x84xf32> -> vector<28x84xf32>
    %c0_33 = arith.constant 0 : index
    %c0_34 = arith.constant 0 : index
    %46 = vector.load %arg15[%c0_33, %c0_34] : memref<28x84xf32, #tpu.memory_space<vmem>>, vector<28x84xf32>
    tpu.vector_store %arg15[%c0_33, %c0_34], %45 {strides = array<i32>} : memref<28x84xf32, #tpu.memory_space<vmem>>, vector<28x84xf32>,
    %cst_35 = arith.constant 0.000000e+00 : f32
    %47 = vector.broadcast %cst_35 : f32 to vector<20x160xf32>
    %c0_36 = arith.constant 0 : index
    %c0_37 = arith.constant 0 : index
    %48 = vector.load %arg15[%c0_36, %c0_37] : memref<28x84xf32, #tpu.memory_space<vmem>>, vector<20x84xf32>
    %c0_38 = arith.constant 0 : index
    %c0_39 = arith.constant 0 : index
    %c0_40 = arith.constant 0 : index
    %49 = vector.load %arg6[%c0_38, %c0_39, %c0_40] : memref<5x84x160xbf16, #tpu.memory_space<vmem>>, vector<1x84x160xbf16>
    %50 = vector.shape_cast %49 : vector<1x84x160xbf16> to vector<84x160xbf16>
    %51 = arith.truncf %48 : vector<20x84xf32> to vector<20x84xbf16>
    %cst_41 = arith.constant dense<0.000000e+00> : vector<20x160xf32>
    %52 = tpu.matmul %51, %50, %cst_41 {dimension_numbers = #tpu.dot_dimension_numbers<[1], [0], [0], [1], [0, 0, 1, 1], [], []>} : vector<20x84xbf16>, vector<84x160xbf16>, vector<20x160xf32> -> vector<20x160xf32>
    %53 = arith.addf %47, %52 : vector<20x160xf32>
    %c2_42 = arith.constant 2 : index
    %c0_43 = arith.constant 0 : index
    %54 = vector.load %arg15[%c2_42, %c0_43] : memref<28x84xf32, #tpu.memory_space<vmem>>, vector<20x84xf32>
    %c1_44 = arith.constant 1 : index
    %c0_45 = arith.constant 0 : index
    %c0_46 = arith.constant 0 : index
    %55 = vector.load %arg6[%c1_44, %c0_45, %c0_46] : memref<5x84x160xbf16, #tpu.memory_space<vmem>>, vector<1x84x160xbf16>
    %56 = vector.shape_cast %55 : vector<1x84x160xbf16> to vector<84x160xbf16>
    %57 = arith.truncf %54 : vector<20x84xf32> to vector<20x84xbf16>
    %cst_47 = arith.constant dense<0.000000e+00> : vector<20x160xf32>
    %58 = tpu.matmul %57, %56, %cst_47 {dimension_numbers = #tpu.dot_dimension_numbers<[1], [0], [0], [1], [0, 0, 1, 1], [], []>} : vector<20x84xbf16>, vector<84x160xbf16>, vector<20x160xf32> -> vector<20x160xf32>
    %59 = arith.addf %53, %58 : vector<20x160xf32>
    %c4_48 = arith.constant 4 : index
    %c0_49 = arith.constant 0 : index
    %60 = vector.load %arg15[%c4_48, %c0_49] : memref<28x84xf32, #tpu.memory_space<vmem>>, vector<20x84xf32>
    %c2_50 = arith.constant 2 : index
    %c0_51 = arith.constant 0 : index
    %c0_52 = arith.constant 0 : index
    %61 = vector.load %arg6[%c2_50, %c0_51, %c0_52] : memref<5x84x160xbf16, #tpu.memory_space<vmem>>, vector<1x84x160xbf16>
    %62 = vector.shape_cast %61 : vector<1x84x160xbf16> to vector<84x160xbf16>
    %63 = arith.truncf %60 : vector<20x84xf32> to vector<20x84xbf16>
    %cst_53 = arith.constant dense<0.000000e+00> : vector<20x160xf32>
    %64 = tpu.matmul %63, %62, %cst_53 {dimension_numbers = #tpu.dot_dimension_numbers<[1], [0], [0], [1], [0, 0, 1, 1], [], []>} : vector<20x84xbf16>, vector<84x160xbf16>, vector<20x160xf32> -> vector<20x160xf32>
    %65 = arith.addf %59, %64 : vector<20x160xf32>
    %c6_54 = arith.constant 6 : index
    %c0_55 = arith.constant 0 : index
    %66 = vector.load %arg15[%c6_54, %c0_55] : memref<28x84xf32, #tpu.memory_space<vmem>>, vector<20x84xf32>
    %c3_56 = arith.constant 3 : index
    %c0_57 = arith.constant 0 : index
    %c0_58 = arith.constant 0 : index
    %67 = vector.load %arg6[%c3_56, %c0_57, %c0_58] : memref<5x84x160xbf16, #tpu.memory_space<vmem>>, vector<1x84x160xbf16>
    %68 = vector.shape_cast %67 : vector<1x84x160xbf16> to vector<84x160xbf16>
    %69 = arith.truncf %66 : vector<20x84xf32> to vector<20x84xbf16>
    %cst_59 = arith.constant dense<0.000000e+00> : vector<20x160xf32>
    %70 = tpu.matmul %69, %68, %cst_59 {dimension_numbers = #tpu.dot_dimension_numbers<[1], [0], [0], [1], [0, 0, 1, 1], [], []>} : vector<20x84xbf16>, vector<84x160xbf16>, vector<20x160xf32> -> vector<20x160xf32>
    %71 = arith.addf %65, %70 : vector<20x160xf32>
    %c8_60 = arith.constant 8 : index
    %c0_61 = arith.constant 0 : index
    %72 = vector.load %arg15[%c8_60, %c0_61] : memref<28x84xf32, #tpu.memory_space<vmem>>, vector<20x84xf32>
    %c4_62 = arith.constant 4 : index
    %c0_63 = arith.constant 0 : index
    %c0_64 = arith.constant 0 : index
    %73 = vector.load %arg6[%c4_62, %c0_63, %c0_64] : memref<5x84x160xbf16, #tpu.memory_space<vmem>>, vector<1x84x160xbf16>
    %74 = vector.shape_cast %73 : vector<1x84x160xbf16> to vector<84x160xbf16>
    %75 = arith.truncf %72 : vector<20x84xf32> to vector<20x84xbf16>
    %cst_65 = arith.constant dense<0.000000e+00> : vector<20x160xf32>
    %76 = tpu.matmul %75, %74, %cst_65 {dimension_numbers = #tpu.dot_dimension_numbers<[1], [0], [0], [1], [0, 0, 1, 1], [], []>} : vector<20x84xbf16>, vector<84x160xbf16>, vector<20x160xf32> -> vector<20x160xf32>
    %77 = arith.addf %71, %76 : vector<20x160xf32>
    %c0_66 = arith.constant 0 : index
    %c0_67 = arith.constant 0 : index
    %78 = vector.load %arg7[%c0_66, %c0_67] : memref<1x160xf32, #tpu.memory_space<vmem>>, vector<1x160xf32>
    %79 = vector.broadcast %78 : vector<1x160xf32> to vector<20x160xf32>
    %80 = arith.addf %77, %79 : vector<20x160xf32>
    %c0_68 = arith.constant 0 : index
    %c0_69 = arith.constant 0 : index
    %81 = vector.load %arg8[%c0_68, %c0_69] : memref<10x20xbf16, #tpu.memory_space<vmem>>, vector<10x20xbf16>
    %c0_70 = arith.constant 0 : index
    %c0_71 = arith.constant 0 : index
    %82 = vector.load %arg9[%c0_70, %c0_71] : memref<160x80xbf16, #tpu.memory_space<vmem>>, vector<160x80xbf16>
    %83 = arith.truncf %80 : vector<20x160xf32> to vector<20x160xbf16>
    %cst_72 = arith.constant dense<0.000000e+00> : vector<20x80xf32>
    %84 = tpu.matmul %83, %82, %cst_72 {dimension_numbers = #tpu.dot_dimension_numbers<[1], [0], [0], [1], [0, 0, 1, 1], [], []>} : vector<20x160xbf16>, vector<160x80xbf16>, vector<20x80xf32> -> vector<20x80xf32>
    %85 = arith.truncf %84 : vector<20x80xf32> to vector<20x80xbf16>
    %cst_73 = arith.constant dense<0.000000e+00> : vector<10x80xf32>
    %86 = tpu.matmul %81, %85, %cst_73 {dimension_numbers = #tpu.dot_dimension_numbers<[1], [0], [0], [1], [0, 0, 1, 1], [], []>} : vector<10x20xbf16>, vector<20x80xbf16>, vector<10x80xf32> -> vector<10x80xf32>
    %c0_74 = arith.constant 0 : index
    %c0_75 = arith.constant 0 : index
    %87 = vector.load %arg16[%c0_74, %c0_75] : memref<10x80xf32, #tpu.memory_space<vmem>>, vector<10x80xf32>
    tpu.vector_store %arg16[%c0_74, %c0_75], %86 {strides = array<i32>} : memref<10x80xf32, #tpu.memory_space<vmem>>, vector<10x80xf32>,
    %cst_76 = arith.constant 0.000000e+00 : f32
    %88 = vector.broadcast %cst_76 : f32 to vector<2x12xf32>
    %c0_77 = arith.constant 0 : index
    %c0_78 = arith.constant 0 : index
    %89 = vector.load %arg16[%c0_77, %c0_78] : memref<10x80xf32, #tpu.memory_space<vmem>>, vector<2x80xf32>
    %c0_79 = arith.constant 0 : index
    %c0_80 = arith.constant 0 : index
    %c0_81 = arith.constant 0 : index
    %90 = vector.load %arg10[%c0_79, %c0_80, %c0_81] : memref<5x80x12xbf16, #tpu.memory_space<vmem>>, vector<1x80x12xbf16>
    %91 = vector.shape_cast %90 : vector<1x80x12xbf16> to vector<80x12xbf16>
    %92 = arith.truncf %89 : vector<2x80xf32> to vector<2x80xbf16>
    %cst_82 = arith.constant dense<0.000000e+00> : vector<2x12xf32>
    %93 = tpu.matmul %92, %91, %cst_82 {dimension_numbers = #tpu.dot_dimension_numbers<[1], [0], [0], [1], [0, 0, 1, 1], [], []>} : vector<2x80xbf16>, vector<80x12xbf16>, vector<2x12xf32> -> vector<2x12xf32>
    %94 = arith.addf %88, %93 : vector<2x12xf32>
    %c2_83 = arith.constant 2 : index
    %c0_84 = arith.constant 0 : index
    %95 = vector.load %arg16[%c2_83, %c0_84] : memref<10x80xf32, #tpu.memory_space<vmem>>, vector<2x80xf32>
    %c1_85 = arith.constant 1 : index
    %c0_86 = arith.constant 0 : index
    %c0_87 = arith.constant 0 : index
    %96 = vector.load %arg10[%c1_85, %c0_86, %c0_87] : memref<5x80x12xbf16, #tpu.memory_space<vmem>>, vector<1x80x12xbf16>
    %97 = vector.shape_cast %96 : vector<1x80x12xbf16> to vector<80x12xbf16>
    %98 = arith.truncf %95 : vector<2x80xf32> to vector<2x80xbf16>
    %cst_88 = arith.constant dense<0.000000e+00> : vector<2x12xf32>
    %99 = tpu.matmul %98, %97, %cst_88 {dimension_numbers = #tpu.dot_dimension_numbers<[1], [0], [0], [1], [0, 0, 1, 1], [], []>} : vector<2x80xbf16>, vector<80x12xbf16>, vector<2x12xf32> -> vector<2x12xf32>
    %100 = arith.addf %94, %99 : vector<2x12xf32>
    %c4_89 = arith.constant 4 : index
    %c0_90 = arith.constant 0 : index
    %101 = vector.load %arg16[%c4_89, %c0_90] : memref<10x80xf32, #tpu.memory_space<vmem>>, vector<2x80xf32>
    %c2_91 = arith.constant 2 : index
    %c0_92 = arith.constant 0 : index
    %c0_93 = arith.constant 0 : index
    %102 = vector.load %arg10[%c2_91, %c0_92, %c0_93] : memref<5x80x12xbf16, #tpu.memory_space<vmem>>, vector<1x80x12xbf16>
    %103 = vector.shape_cast %102 : vector<1x80x12xbf16> to vector<80x12xbf16>
    %104 = arith.truncf %101 : vector<2x80xf32> to vector<2x80xbf16>
    %cst_94 = arith.constant dense<0.000000e+00> : vector<2x12xf32>
    %105 = tpu.matmul %104, %103, %cst_94 {dimension_numbers = #tpu.dot_dimension_numbers<[1], [0], [0], [1], [0, 0, 1, 1], [], []>} : vector<2x80xbf16>, vector<80x12xbf16>, vector<2x12xf32> -> vector<2x12xf32>
    %106 = arith.addf %100, %105 : vector<2x12xf32>
    %c6_95 = arith.constant 6 : index
    %c0_96 = arith.constant 0 : index
    %107 = vector.load %arg16[%c6_95, %c0_96] : memref<10x80xf32, #tpu.memory_space<vmem>>, vector<2x80xf32>
    %c3_97 = arith.constant 3 : index
    %c0_98 = arith.constant 0 : index
    %c0_99 = arith.constant 0 : index
    %108 = vector.load %arg10[%c3_97, %c0_98, %c0_99] : memref<5x80x12xbf16, #tpu.memory_space<vmem>>, vector<1x80x12xbf16>
    %109 = vector.shape_cast %108 : vector<1x80x12xbf16> to vector<80x12xbf16>
    %110 = arith.truncf %107 : vector<2x80xf32> to vector<2x80xbf16>
    %cst_100 = arith.constant dense<0.000000e+00> : vector<2x12xf32>
    %111 = tpu.matmul %110, %109, %cst_100 {dimension_numbers = #tpu.dot_dimension_numbers<[1], [0], [0], [1], [0, 0, 1, 1], [], []>} : vector<2x80xbf16>, vector<80x12xbf16>, vector<2x12xf32> -> vector<2x12xf32>
    %112 = arith.addf %106, %111 : vector<2x12xf32>
    %c8_101 = arith.constant 8 : index
    %c0_102 = arith.constant 0 : index
    %113 = vector.load %arg16[%c8_101, %c0_102] : memref<10x80xf32, #tpu.memory_space<vmem>>, vector<2x80xf32>
    %c4_103 = arith.constant 4 : index
    %c0_104 = arith.constant 0 : index
    %c0_105 = arith.constant 0 : index
    %114 = vector.load %arg10[%c4_103, %c0_104, %c0_105] : memref<5x80x12xbf16, #tpu.memory_space<vmem>>, vector<1x80x12xbf16>
    %115 = vector.shape_cast %114 : vector<1x80x12xbf16> to vector<80x12xbf16>
    %116 = arith.truncf %113 : vector<2x80xf32> to vector<2x80xbf16>
    %cst_106 = arith.constant dense<0.000000e+00> : vector<2x12xf32>
    %117 = tpu.matmul %116, %115, %cst_106 {dimension_numbers = #tpu.dot_dimension_numbers<[1], [0], [0], [1], [0, 0, 1, 1], [], []>} : vector<2x80xbf16>, vector<80x12xbf16>, vector<2x12xf32> -> vector<2x12xf32>
    %118 = arith.addf %112, %117 : vector<2x12xf32>
    %c0_107 = arith.constant 0 : index
    %c0_108 = arith.constant 0 : index
    %119 = vector.load %arg11[%c0_107, %c0_108] : memref<1x12xf32, #tpu.memory_space<vmem>>, vector<1x12xf32>
    %120 = vector.broadcast %119 : vector<1x12xf32> to vector<2x12xf32>
    %121 = arith.addf %118, %120 : vector<2x12xf32>
    %c0_109 = arith.constant 0 : index
    %c0_110 = arith.constant 0 : index
    %122 = vector.load %arg12[%c0_109, %c0_110] : memref<12x10xbf16, #tpu.memory_space<vmem>>, vector<12x10xbf16>
    %123 = arith.truncf %121 : vector<2x12xf32> to vector<2x12xbf16>
    %cst_111 = arith.constant dense<0.000000e+00> : vector<2x10xf32>
    %124 = tpu.matmul %123, %122, %cst_111 {dimension_numbers = #tpu.dot_dimension_numbers<[1], [0], [0], [1], [0, 0, 1, 1], [], []>} : vector<2x12xbf16>, vector<12x10xbf16>, vector<2x10xf32> -> vector<2x10xf32>
    %c0_112 = arith.constant 0 : index
    %c0_113 = arith.constant 0 : index
    %125 = vector.load %arg13[%c0_112, %c0_113] : memref<1x10xf32, #tpu.memory_space<vmem>>, vector<1x10xf32>
    %126 = vector.broadcast %125 : vector<1x10xf32> to vector<2x10xf32>
    %127 = arith.addf %124, %126 : vector<2x10xf32>
    %cst_114 = arith.constant dense<0xFF800000> : vector<2xf32>
    %128 = vector.multi_reduction <maximumf>, %127, %cst_114 [1] : vector<2x10xf32> to vector<2xf32>
    %129 = vector.shape_cast %128 : vector<2xf32> to vector<2x1xf32>
    %130 = vector.broadcast %129 : vector<2x1xf32> to vector<2x10xf32>
    %131 = arith.subf %127, %130 : vector<2x10xf32>
    %132 = math.exp %131 : vector<2x10xf32>
    %cst_115 = arith.constant dense<0.000000e+00> : vector<2xf32>
    %133 = vector.multi_reduction <add>, %132, %cst_115 [1] : vector<2x10xf32> to vector<2xf32>
    %134 = vector.shape_cast %133 : vector<2xf32> to vector<2x1xf32>
    %135 = math.log %134 : vector<2x1xf32>
    %136 = vector.broadcast %135 : vector<2x1xf32> to vector<2x10xf32>
    %137 = arith.subf %131, %136 : vector<2x10xf32>
    %c0_116 = arith.constant 0 : index
    %c0_117 = arith.constant 0 : index
    %138 = vector.load %arg14[%c0_116, %c0_117] : memref<2x10xf32, #tpu.memory_space<vmem>>, vector<2x10xf32>
    tpu.vector_store %arg14[%c0_116, %c0_117], %137 {strides = array<i32>} : memref<2x10xf32, #tpu.memory_space<vmem>>, vector<2x10xf32>,
    return
  }
  func.func @transform_0(%arg0: i32) -> (i32, i32) {
    %c0_i32 = arith.constant 0 : i32
    %c0_i32_0 = arith.constant 0 : i32
    %c0_i32_1 = arith.constant 0 : i32
    return %c0_i32, %c0_i32_0 : i32, i32
  }
  func.func @transform_1(%arg0: i32) -> (i32, i32, i32) {
    %c0_i32 = arith.constant 0 : i32
    %c0_i32_0 = arith.constant 0 : i32
    %c0_i32_1 = arith.constant 0 : i32
    %c0_i32_2 = arith.constant 0 : i32
    return %c0_i32, %c0_i32_0, %c0_i32_1 : i32, i32, i32
  }
  func.func @transform_2(%arg0: i32) -> (i32, i32) {
    %c0_i32 = arith.constant 0 : i32
    %c0_i32_0 = arith.constant 0 : i32
    %c0_i32_1 = arith.constant 0 : i32
    return %c0_i32, %c0_i32_0 : i32, i32
  }
  func.func @transform_3(%arg0: i32) -> (i32, i32) {
    %c0_i32 = arith.constant 0 : i32
    %c0_i32_0 = arith.constant 0 : i32
    %c0_i32_1 = arith.constant 0 : i32
    return %c0_i32, %c0_i32_0 : i32, i32
  }
  func.func @transform_4(%arg0: i32) -> (i32, i32) {
    %c0_i32 = arith.constant 0 : i32
    %c0_i32_0 = arith.constant 0 : i32
    %c0_i32_1 = arith.constant 0 : i32
    return %c0_i32, %c0_i32_0 : i32, i32
  }
  func.func @transform_5(%arg0: i32) -> (i32, i32, i32) {
    %c0_i32 = arith.constant 0 : i32
    %c0_i32_0 = arith.constant 0 : i32
    %c0_i32_1 = arith.constant 0 : i32
    %c0_i32_2 = arith.constant 0 : i32
    return %c0_i32, %c0_i32_0, %c0_i32_1 : i32, i32, i32
  }
  func.func @transform_6(%arg0: i32) -> (i32, i32) {
    %c0_i32 = arith.constant 0 : i32
    %c0_i32_0 = arith.constant 0 : i32
    %c0_i32_1 = arith.constant 0 : i32
    return %c0_i32, %c0_i32_0 : i32, i32
  }
  func.func @transform_7(%arg0: i32) -> (i32, i32) {
    %c0_i32 = arith.constant 0 : i32
    %c0_i32_0 = arith.constant 0 : i32
    %c0_i32_1 = arith.constant 0 : i32
    return %c0_i32, %c0_i32_0 : i32, i32
  }
  func.func @transform_8(%arg0: i32) -> (i32, i32) {
    %c0_i32 = arith.constant 0 : i32
    %c0_i32_0 = arith.constant 0 : i32
    %c0_i32_1 = arith.constant 0 : i32
    return %c0_i32, %c0_i32_0 : i32, i32
  }
  func.func @transform_9(%arg0: i32) -> (i32, i32, i32) {
    %c0_i32 = arith.constant 0 : i32
    %c0_i32_0 = arith.constant 0 : i32
    %c0_i32_1 = arith.constant 0 : i32
    %c0_i32_2 = arith.constant 0 : i32
    return %c0_i32, %c0_i32_0, %c0_i32_1 : i32, i32, i32
  }
  func.func @transform_10(%arg0: i32) -> (i32, i32) {
    %c0_i32 = arith.constant 0 : i32
    %c0_i32_0 = arith.constant 0 : i32
    %c0_i32_1 = arith.constant 0 : i32
    return %c0_i32, %c0_i32_0 : i32, i32
  }
  func.func @transform_11(%arg0: i32) -> (i32, i32) {
    %c0_i32 = arith.constant 0 : i32
    %c0_i32_0 = arith.constant 0 : i32
    %c0_i32_1 = arith.constant 0 : i32
    return %c0_i32, %c0_i32_0 : i32, i32
  }
  func.func @transform_12(%arg0: i32) -> (i32, i32) {
    %c0_i32 = arith.constant 0 : i32
    %c0_i32_0 = arith.constant 0 : i32
    %c0_i32_1 = arith.constant 0 : i32
    return %c0_i32, %c0_i32_0 : i32, i32
  }
  func.func @transform_13(%arg0: i32) -> (i32, i32) {
    %c0_i32 = arith.constant 0 : i32
    %c0_i32_0 = arith.constant 0 : i32
    %c0_i32_1 = arith.constant 0 : i32
    return %c0_i32, %c0_i32_0 : i32, i32
  }
}

</mosaic_0001>

<llo_original>
// kernel: net_forward.1
$region0: #{net_forward.1}
  #allocation0 [shape = 'u32[]', space=smem, size = 0x4, offset = 0x4, fixed_abs, tag = 'smem constant byte address 0x4 - core index']
  #allocation1 [shape = 'u32[144,128]{1,0:T(1,128)}', space=vmem, size = 0x12000, scoped, tag = 'internal scratch']
  #allocation2 [shape = 'f32[28,84]{1,0:T(8,128)}', space=vmem, size = 0x4000, scoped, tag = 'scratch operand']
  #allocation3 [shape = 'f32[10,80]{1,0:T(8,128)}', space=vmem, size = 0x2000, scoped, tag = 'scratch operand']
  %s0 = inlined_call_operand.vmem [shape: f32[64,32], index: 0, kind: input, shape index: {}]
  %s1 = inlined_call_operand.vmem [shape: bf16[5,32,168], index: 1, kind: input, shape index: {}]
  %s2 = inlined_call_operand.vmem [shape: f32[1,168], index: 2, kind: input, shape index: {}]
  %s3 = inlined_call_operand.vmem [shape: bf16[28,56], index: 3, kind: input, shape index: {}]
  %s4 = inlined_call_operand.vmem [shape: bf16[168,84], index: 4, kind: input, shape index: {}]
  %s5 = inlined_call_operand.vmem [shape: bf16[5,84,160], index: 5, kind: input, shape index: {}]
  %s6 = inlined_call_operand.vmem [shape: f32[1,160], index: 6, kind: input, shape index: {}]
  %s7 = inlined_call_operand.vmem [shape: bf16[10,20], index: 7, kind: input, shape index: {}]
  %s8 = inlined_call_operand.vmem [shape: bf16[160,80], index: 8, kind: input, shape index: {}]
  %s9 = inlined_call_operand.vmem [shape: bf16[5,80,12], index: 9, kind: input, shape index: {}]
  %s10 = inlined_call_operand.vmem [shape: f32[1,12], index: 10, kind: input, shape index: {}]
  %s11 = inlined_call_operand.vmem [shape: bf16[12,10], index: 11, kind: input, shape index: {}]
  %s12 = inlined_call_operand.vmem [shape: f32[1,10], index: 12, kind: input, shape index: {}]
  %s13 = inlined_call_operand.hbm [shape: f32[2,10], index: 13, kind: output, shape index: {}]
  %s14 = sld [smem:[#allocation0]]
  $region62: #{net_forward.1} parent=0
    _
  %s16 = ssub.s32 1, %s14
  %s17 = scalar_select 0, %s16, %s14
  $region1: #{net_forward.1} parent=0
    #allocation4 [shape = 'u8[1024]{0}', space=vmem, size = 0x400, scoped, tag = 'output window, operand 0, single buffered']
    #allocation5 [shape = 's32[1]{0}', space=sflag, size = 0x4, scoped, tag = 'scoped memory for net_forward.1']
    %18 = vsyncpa [#allocation5], 0
    // Predicated region
    $region2: #{net_forward.1} parent=1 // pred_check
      _
    $region3: #{net_forward.1} parent=1 // pred_check_branch
      %20 = sbr.rel (0) target = $region5
    $region4: #{net_forward.1} parent=1 // pred_region
      _
    $region5: #{net_forward.1} parent=1 // pred_fallthru
      _
    // Predicated region
    $region6: #{net_forward.1} parent=1 // pred_check
      _
    $region7: #{net_forward.1} parent=1 // pred_check_branch
      %22 = sbr.rel (0) target = $region9
    $region8: #{net_forward.1} parent=1 // pred_region
      _
    $region9: #{net_forward.1} parent=1 // pred_fallthru
      _
    // Predicated region
    $region10: #{net_forward.1} parent=1 // pred_check
      _
    $region11: #{net_forward.1} parent=1 // pred_check_branch
      %24 = sbr.rel (0) target = $region13
    $region12: #{net_forward.1} parent=1 // pred_region
      _
    $region13: #{net_forward.1} parent=1 // pred_fallthru
      _
    // Predicated region
    $region14: #{net_forward.1} parent=1 // pred_check
      _
    $region15: #{net_forward.1} parent=1 // pred_check_branch
      %26 = sbr.rel (0) target = $region17
    $region16: #{net_forward.1} parent=1 // pred_region
      _
    $region17: #{net_forward.1} parent=1 // pred_fallthru
      _
    // Predicated region
    $region18: #{net_forward.1} parent=1 // pred_check
      _
    $region19: #{net_forward.1} parent=1 // pred_check_branch
      %28 = sbr.rel (0) target = $region21
    $region20: #{net_forward.1} parent=1 // pred_region
      _
    $region21: #{net_forward.1} parent=1 // pred_fallthru
      _
    // Predicated region
    $region22: #{net_forward.1} parent=1 // pred_check
      _
    $region23: #{net_forward.1} parent=1 // pred_check_branch
      %30 = sbr.rel (0) target = $region25
    $region24: #{net_forward.1} parent=1 // pred_region
      _
    $region25: #{net_forward.1} parent=1 // pred_fallthru
      _
    // Predicated region
    $region26: #{net_forward.1} parent=1 // pred_check
      _
    $region27: #{net_forward.1} parent=1 // pred_check_branch
      %32 = sbr.rel (0) target = $region29
    $region28: #{net_forward.1} parent=1 // pred_region
      _
    $region29: #{net_forward.1} parent=1 // pred_fallthru
      _
    // Predicated region
    $region30: #{net_forward.1} parent=1 // pred_check
      _
    $region31: #{net_forward.1} parent=1 // pred_check_branch
      %34 = sbr.rel (0) target = $region33
    $region32: #{net_forward.1} parent=1 // pred_region
      _
    $region33: #{net_forward.1} parent=1 // pred_fallthru
      _
    // Predicated region
    $region34: #{net_forward.1} parent=1 // pred_check
      _
    $region35: #{net_forward.1} parent=1 // pred_check_branch
      %36 = sbr.rel (0) target = $region37
    $region36: #{net_forward.1} parent=1 // pred_region
      _
    $region37: #{net_forward.1} parent=1 // pred_fallthru
      _
    // Predicated region
    $region38: #{net_forward.1} parent=1 // pred_check
      _
    $region39: #{net_forward.1} parent=1 // pred_check_branch
      %38 = sbr.rel (0) target = $region41
    $region40: #{net_forward.1} parent=1 // pred_region
      _
    $region41: #{net_forward.1} parent=1 // pred_fallthru
      _
    // Predicated region
    $region42: #{net_forward.1} parent=1 // pred_check
      _
    $region43: #{net_forward.1} parent=1 // pred_check_branch
      %40 = sbr.rel (0) target = $region45
    $region44: #{net_forward.1} parent=1 // pred_region
      _
    $region45: #{net_forward.1} parent=1 // pred_fallthru
      _
    // Predicated region
    $region46: #{net_forward.1} parent=1 // pred_check
      _
    $region47: #{net_forward.1} parent=1 // pred_check_branch
      %42 = sbr.rel (0) target = $region49
    $region48: #{net_forward.1} parent=1 // pred_region
      _
    $region49: #{net_forward.1} parent=1 // pred_fallthru
      _
    // Predicated region
    $region50: #{net_forward.1} parent=1 // pred_check
      _
    $region51: #{net_forward.1} parent=1 // pred_check_branch
      %44 = sbr.rel (0) target = $region53
    $region52: #{net_forward.1} parent=1 // pred_region
      _
    $region53: #{net_forward.1} parent=1 // pred_fallthru
      _
    %v46 = vld [vmem:[%s0] sm:$0xff]
    %v47 = vld [vmem:[%s0 + $0x8] sm:$0xff]
    %v48 = vld [vmem:[%s0 + $0x10] sm:$0xff]
    %v49 = vld [vmem:[%s0 + $0x18] sm:$0xff]
    %v50 = vld [vmem:[%s0 + $0x20] sm:$0xff]
    %v51 = vld [vmem:[%s0 + $0x28] sm:$0xff]
    %v52 = vld [vmem:[%s0 + $0x30] sm:$0xff]
    %v53 = vld [vmem:[%s1] sm:$0xff]
    %v54 = vld [vmem:[%s1 + $0x8] sm:$0xff]
    %v55 = vld [vmem:[%s1 + $0x10] sm:$0xff]
    %v56 = vld [vmem:[%s1 + $0x18] sm:$0xff]
    %v57 = vpack.c.bf16 %v47, %v46
    %v58 = vpack.c.bf16 %v49, %v48
    %v59 = vpack.c.bf16 %v51, %v50
    %v60 = vpack.c.bf16 %v52, %v52
    %v61 = vld [vmem:[%s0 + $0x2] sm:$0xff]
    %v62 = vld [vmem:[%s0 + $0xa] sm:$0xff]
    %v63 = vld [vmem:[%s0 + $0x12] sm:$0xff]
    %v64 = vld [vmem:[%s0 + $0x1a] sm:$0xff]
    %v65 = vld [vmem:[%s0 + $0x22] sm:$0xff]
    %v66 = vld [vmem:[%s0 + $0x2a] sm:$0xff]
    %v67 = vld [vmem:[%s0 + $0x32] sm:$0xff]
    %s68 = scalar_lea.vmem %s1, 32
    %v69 = vld [vmem:[%s68] sm:$0xff]
    %v70 = vld [vmem:[%s68 + $0x8] sm:$0xff]
    %v71 = vld [vmem:[%s68 + $0x10] sm:$0xff]
    %v72 = vld [vmem:[%s68 + $0x18] sm:$0xff]
    %v73 = vpack.c.bf16 %v62, %v61
    %v74 = vpack.c.bf16 %v64, %v63
    %v75 = vpack.c.bf16 %v66, %v65
    %v76 = vpack.c.bf16 %v67, %v67
    %v81 = vunpack.c.l.b16 %v69
    %v82 = vunpack.c.h.b16 %v69
    %v83 = vunpack.c.l.b16 %v70
    %v84 = vunpack.c.h.b16 %v70
    %v85 = vunpack.c.l.b16 %v71
    %v86 = vunpack.c.h.b16 %v71
    %v87 = vunpack.c.l.b16 %v72
    %v88 = vunpack.c.h.b16 %v72
    %v89 = vpack.c.b16 %v83, %v81
    %v90 = vpack.c.b16 %v84, %v82
    %v91 = vpack.c.b16 %v87, %v85
    %v92 = vpack.c.b16 %v88, %v86
    %vm97 = vcmask 261120
    %v99 = vsel %vm97, %v73, 0
    %v102 = vsel %vm97, %v74, 0
    %v105 = vsel %vm97, %v75, 0
    %v108 = vsel %vm97, %v76, 0
    %110 = vmatprep.subr.bf16.mxu0 0
    %111 = vmatpush1.bf16.msra.mxu0 0
    %112 = vmatprep.subr.bf16.mxu0 0
    %113 = vmatpush1.bf16.msra.mxu0 0
    %114 = vmatprep.subr.bf16.mxu0 0
    %115 = vmatpush1.bf16.msra.mxu0 0
    %116 = vmatprep.subr.bf16.mxu0 0
    %117 = vmatpush1.bf16.msra.mxu0 0
    %118 = vmatprep.subr.bf16.mxu0 0
    %119 = vmatpush1.bf16.msra.mxu0 0
    %120 = vmatprep.subr.bf16.mxu0 0
    %121 = vmatpush1.bf16.msra.mxu0 0
    %122 = vmatprep.subr.bf16.mxu0 %v92
    %123 = vmatpush1.bf16.msra.mxu0 %v91
    %124 = vmatprep.subr.bf16.mxu0 %v90
    %125 = vmatpush1.bf16.msra.mxu0 %v89
    %126 = vmatprep.subr.bf16.mxu0 0
    %127 = vmatpush2.bf16.msra.mxu0 0
    %128 = vmatprep.subr.bf16.mxu0 0
    %129 = vmatpush2.bf16.msra.mxu0 0
    %130 = vmatprep.subr.bf16.mxu0 0
    %131 = vmatpush2.bf16.msra.mxu0 0
    %132 = vmatprep.subr.bf16.mxu0 0
    %133 = vmatpush2.bf16.msra.mxu0 0
    %134 = vmatprep.subr.bf16.mxu0 0
    %135 = vmatpush2.bf16.msra.mxu0 0
    %136 = vmatprep.subr.bf16.mxu0 0
    %137 = vmatpush2.bf16.msra.mxu0 0
    %138 = vmatprep.subr.bf16.mxu0 0
    %139 = vmatpush2.bf16.msra.mxu0 0
    %140 = vmatprep.subr.bf16.mxu0 0
    %141 = vmatpush2.bf16.msra.mxu0 0
    %142 = vmatprep.mubr.bf16.mxu0 0
    %143 = vmatmul.mubr.bf16.gmra.mxu0 %v99
    %v144 = vpop.f32.mrf.mxu0
    %v145 = vadd.f32 0.0, %v144
    %v146 = vpop.f32.mrf.mxu0
    %v147 = vadd.f32 0.0, %v146
    %v148 = vpop.f32.mrf.mxu0
    %v149 = vadd.f32 0.0, %v148
    %v150 = vpop.f32.mrf.mxu0
    %v151 = vadd.f32 0.0, %v150
    %152 = vmatprep.mubr.bf16.mxu0 0
    %153 = vmatmul.mubr.bf16.gmra.mxu0 %v102
    %v154 = vpop.f32.mrf.mxu0
    %v155 = vadd.f32 0.0, %v154
    %v156 = vpop.f32.mrf.mxu0
    %v157 = vadd.f32 0.0, %v156
    %v158 = vpop.f32.mrf.mxu0
    %v159 = vadd.f32 0.0, %v158
    %v160 = vpop.f32.mrf.mxu0
    %v161 = vadd.f32 0.0, %v160
    %162 = vmatprep.mubr.bf16.mxu0 0
    %163 = vmatmul.mubr.bf16.gmra.mxu0 %v105
    %v164 = vpop.f32.mrf.mxu0
    %v165 = vadd.f32 0.0, %v164
    %v166 = vpop.f32.mrf.mxu0
    %v167 = vadd.f32 0.0, %v166
    %v168 = vpop.f32.mrf.mxu0
    %v169 = vadd.f32 0.0, %v168
    %v170 = vpop.f32.mrf.mxu0
    %v171 = vadd.f32 0.0, %v170
    %172 = vmatprep.mubr.bf16.mxu0 0
    %173 = vmatmul.mubr.bf16.gmra.mxu0 %v108
    %v174 = vpop.f32.mrf.mxu0
    %v175 = vadd.f32 0.0, %v174
    %v176 = vpop.f32.mrf.mxu0
    %v177 = vadd.f32 0.0, %v176
    %v178 = vpop.f32.mrf.mxu0
    %v179 = vpop.f32.mrf.mxu0
    %180 = vdwg.mxu0
    %v185 = vunpack.c.l.b16 %v53
    %v186 = vunpack.c.h.b16 %v53
    %v187 = vunpack.c.l.b16 %v54
    %v188 = vunpack.c.h.b16 %v54
    %v189 = vunpack.c.l.b16 %v55
    %v190 = vunpack.c.h.b16 %v55
    %v191 = vunpack.c.l.b16 %v56
    %v192 = vunpack.c.h.b16 %v56
    %v193 = vpack.c.b16 %v187, %v185
    %v194 = vpack.c.b16 %v188, %v186
    %v195 = vpack.c.b16 %v191, %v189
    %v196 = vpack.c.b16 %v192, %v190
    %v202 = vsel %vm97, %v57, 0
    %v205 = vsel %vm97, %v58, 0
    %v208 = vsel %vm97, %v59, 0
    %v211 = vsel %vm97, %v60, 0
    %213 = vmatprep.subr.bf16.mxu0 0
    %214 = vmatpush1.bf16.msra.mxu0 0
    %215 = vmatprep.subr.bf16.mxu0 0
    %216 = vmatpush1.bf16.msra.mxu0 0
    %217 = vmatprep.subr.bf16.mxu0 0
    %218 = vmatpush1.bf16.msra.mxu0 0
    %219 = vmatprep.subr.bf16.mxu0 0
    %220 = vmatpush1.bf16.msra.mxu0 0
    %221 = vmatprep.subr.bf16.mxu0 0
    %222 = vmatpush1.bf16.msra.mxu0 0
    %223 = vmatprep.subr.bf16.mxu0 0
    %224 = vmatpush1.bf16.msra.mxu0 0
    %225 = vmatprep.subr.bf16.mxu0 %v196
    %226 = vmatpush1.bf16.msra.mxu0 %v195
    %227 = vmatprep.subr.bf16.mxu0 %v194
    %228 = vmatpush1.bf16.msra.mxu0 %v193
    %229 = vmatprep.subr.bf16.mxu0 0
    %230 = vmatpush2.bf16.msra.mxu0 0
    %231 = vmatprep.subr.bf16.mxu0 0
    %232 = vmatpush2.bf16.msra.mxu0 0
    %233 = vmatprep.subr.bf16.mxu0 0
    %234 = vmatpush2.bf16.msra.mxu0 0
    %235 = vmatprep.subr.bf16.mxu0 0
    %236 = vmatpush2.bf16.msra.mxu0 0
    %237 = vmatprep.subr.bf16.mxu0 0
    %238 = vmatpush2.bf16.msra.mxu0 0
    %239 = vmatprep.subr.bf16.mxu0 0
    %240 = vmatpush2.bf16.msra.mxu0 0
    %241 = vmatprep.subr.bf16.mxu0 0
    %242 = vmatpush2.bf16.msra.mxu0 0
    %243 = vmatprep.subr.bf16.mxu0 0
    %244 = vmatpush2.bf16.msra.mxu0 0
    %245 = vmatprep.mubr.bf16.mxu0 0
    %246 = vmatmul.mubr.bf16.gmra.mxu0 %v202
    %v247 = vpop.f32.mrf.mxu0
    %v248 = vadd.f32 %v145, %v247
    %v249 = vpop.f32.mrf.mxu0
    %v250 = vadd.f32 %v147, %v249
    %v251 = vpop.f32.mrf.mxu0
    %v252 = vadd.f32 %v149, %v251
    %v253 = vpop.f32.mrf.mxu0
    %v254 = vadd.f32 %v151, %v253
    %255 = vmatprep.mubr.bf16.mxu0 0
    %256 = vmatmul.mubr.bf16.gmra.mxu0 %v205
    %v257 = vpop.f32.mrf.mxu0
    %v258 = vadd.f32 %v155, %v257
    %v259 = vpop.f32.mrf.mxu0
    %v260 = vadd.f32 %v157, %v259
    %v261 = vpop.f32.mrf.mxu0
    %v262 = vadd.f32 %v159, %v261
    %v263 = vpop.f32.mrf.mxu0
    %v264 = vadd.f32 %v161, %v263
    %265 = vmatprep.mubr.bf16.mxu0 0
    %266 = vmatmul.mubr.bf16.gmra.mxu0 %v208
    %v267 = vpop.f32.mrf.mxu0
    %v268 = vadd.f32 %v165, %v267
    %v269 = vpop.f32.mrf.mxu0
    %v270 = vadd.f32 %v167, %v269
    %v271 = vpop.f32.mrf.mxu0
    %v272 = vadd.f32 %v169, %v271
    %v273 = vpop.f32.mrf.mxu0
    %v274 = vadd.f32 %v171, %v273
    %275 = vmatprep.mubr.bf16.mxu0 0
    %276 = vmatmul.mubr.bf16.gmra.mxu0 %v211
    %v277 = vpop.f32.mrf.mxu0
    %v278 = vadd.f32 %v175, %v277
    %v279 = vpop.f32.mrf.mxu0
    %v280 = vadd.f32 %v177, %v279
    %v281 = vpop.f32.mrf.mxu0
    %v282 = vpop.f32.mrf.mxu0
    %283 = vdwg.mxu0
    %v284 = vld [vmem:[%s0 + $0x4] sm:$0xff]
    %v285 = vld [vmem:[%s0 + $0xc] sm:$0xff]
    %v286 = vld [vmem:[%s0 + $0x14] sm:$0xff]
    %v287 = vld [vmem:[%s0 + $0x1c] sm:$0xff]
    %v288 = vld [vmem:[%s0 + $0x24] sm:$0xff]
    %v289 = vld [vmem:[%s0 + $0x2c] sm:$0xff]
    %v290 = vld [vmem:[%s0 + $0x34] sm:$0xff]
    %s291 = scalar_lea.vmem %s1, 64
    %v292 = vld [vmem:[%s291] sm:$0xff]
    %v293 = vld [vmem:[%s291 + $0x8] sm:$0xff]
    %v294 = vld [vmem:[%s291 + $0x10] sm:$0xff]
    %v295 = vld [vmem:[%s291 + $0x18] sm:$0xff]
    %v296 = vpack.c.bf16 %v285, %v284
    %v297 = vpack.c.bf16 %v287, %v286
    %v298 = vpack.c.bf16 %v289, %v288
    %v299 = vpack.c.bf16 %v290, %v290
    %v304 = vunpack.c.l.b16 %v292
    %v305 = vunpack.c.h.b16 %v292
    %v306 = vunpack.c.l.b16 %v293
    %v307 = vunpack.c.h.b16 %v293
    %v308 = vunpack.c.l.b16 %v294
    %v309 = vunpack.c.h.b16 %v294
    %v310 = vunpack.c.l.b16 %v295
    %v311 = vunpack.c.h.b16 %v295
    %v312 = vpack.c.b16 %v306, %v304
    %v313 = vpack.c.b16 %v307, %v305
    %v314 = vpack.c.b16 %v310, %v308
    %v315 = vpack.c.b16 %v311, %v309
    %v321 = vsel %vm97, %v296, 0
    %v324 = vsel %vm97, %v297, 0
    %v327 = vsel %vm97, %v298, 0
    %v330 = vsel %vm97, %v299, 0
    %332 = vmatprep.subr.bf16.mxu0 0
    %333 = vmatpush1.bf16.msra.mxu0 0
    %334 = vmatprep.subr.bf16.mxu0 0
    %335 = vmatpush1.bf16.msra.mxu0 0
    %336 = vmatprep.subr.bf16.mxu0 0
    %337 = vmatpush1.bf16.msra.mxu0 0
    %338 = vmatprep.subr.bf16.mxu0 0
    %339 = vmatpush1.bf16.msra.mxu0 0
    %340 = vmatprep.subr.bf16.mxu0 0
    %341 = vmatpush1.bf16.msra.mxu0 0
    %342 = vmatprep.subr.bf16.mxu0 0
    %343 = vmatpush1.bf16.msra.mxu0 0
    %344 = vmatprep.subr.bf16.mxu0 %v315
    %345 = vmatpush1.bf16.msra.mxu0 %v314
    %346 = vmatprep.subr.bf16.mxu0 %v313
    %347 = vmatpush1.bf16.msra.mxu0 %v312
    %348 = vmatprep.subr.bf16.mxu0 0
    %349 = vmatpush2.bf16.msra.mxu0 0
    %350 = vmatprep.subr.bf16.mxu0 0
    %351 = vmatpush2.bf16.msra.mxu0 0
    %352 = vmatprep.subr.bf16.mxu0 0
    %353 = vmatpush2.bf16.msra.mxu0 0
    %354 = vmatprep.subr.bf16.mxu0 0
    %355 = vmatpush2.bf16.msra.mxu0 0
    %356 = vmatprep.subr.bf16.mxu0 0
    %357 = vmatpush2.bf16.msra.mxu0 0
    %358 = vmatprep.subr.bf16.mxu0 0
    %359 = vmatpush2.bf16.msra.mxu0 0
    %360 = vmatprep.subr.bf16.mxu0 0
    %361 = vmatpush2.bf16.msra.mxu0 0
    %362 = vmatprep.subr.bf16.mxu0 0
    %363 = vmatpush2.bf16.msra.mxu0 0
    %364 = vmatprep.mubr.bf16.mxu0 0
    %365 = vmatmul.mubr.bf16.gmra.mxu0 %v321
    %v366 = vpop.f32.mrf.mxu0
    %v367 = vadd.f32 0.0, %v366
    %v368 = vpop.f32.mrf.mxu0
    %v369 = vadd.f32 0.0, %v368
    %v370 = vpop.f32.mrf.mxu0
    %v371 = vadd.f32 0.0, %v370
    %v372 = vpop.f32.mrf.mxu0
    %v373 = vadd.f32 0.0, %v372
    %374 = vmatprep.mubr.bf16.mxu0 0
    %375 = vmatmul.mubr.bf16.gmra.mxu0 %v324
    %v376 = vpop.f32.mrf.mxu0
    %v377 = vadd.f32 0.0, %v376
    %v378 = vpop.f32.mrf.mxu0
    %v379 = vadd.f32 0.0, %v378
    %v380 = vpop.f32.mrf.mxu0
    %v381 = vadd.f32 0.0, %v380
    %v382 = vpop.f32.mrf.mxu0
    %v383 = vadd.f32 0.0, %v382
    %384 = vmatprep.mubr.bf16.mxu0 0
    %385 = vmatmul.mubr.bf16.gmra.mxu0 %v327
    %v386 = vpop.f32.mrf.mxu0
    %v387 = vadd.f32 0.0, %v386
    %v388 = vpop.f32.mrf.mxu0
    %v389 = vadd.f32 0.0, %v388
    %v390 = vpop.f32.mrf.mxu0
    %v391 = vadd.f32 0.0, %v390
    %v392 = vpop.f32.mrf.mxu0
    %v393 = vadd.f32 0.0, %v392
    %394 = vmatprep.mubr.bf16.mxu0 0
    %395 = vmatmul.mubr.bf16.gmra.mxu0 %v330
    %v396 = vpop.f32.mrf.mxu0
    %v397 = vadd.f32 0.0, %v396
    %v398 = vpop.f32.mrf.mxu0
    %v399 = vadd.f32 0.0, %v398
    %v400 = vpop.f32.mrf.mxu0
    %v401 = vpop.f32.mrf.mxu0
    %402 = vdwg.mxu0
    %v403 = vadd.f32 %v248, %v367
    %v404 = vadd.f32 %v250, %v369
    %v405 = vadd.f32 %v252, %v371
    %v406 = vadd.f32 %v254, %v373
    %v407 = vadd.f32 %v258, %v377
    %v408 = vadd.f32 %v260, %v379
    %v409 = vadd.f32 %v262, %v381
    %v410 = vadd.f32 %v264, %v383
    %v411 = vadd.f32 %v268, %v387
    %v412 = vadd.f32 %v270, %v389
    %v413 = vadd.f32 %v272, %v391
    %v414 = vadd.f32 %v274, %v393
    %v415 = vadd.f32 %v278, %v397
    %v416 = vadd.f32 %v280, %v399
    %v417 = vld [vmem:[%s0 + $0x6] sm:$0xff]
    %v418 = vld [vmem:[%s0 + $0xe] sm:$0xff]
    %v419 = vld [vmem:[%s0 + $0x16] sm:$0xff]
    %v420 = vld [vmem:[%s0 + $0x1e] sm:$0xff]
    %v421 = vld [vmem:[%s0 + $0x26] sm:$0xff]
    %v422 = vld [vmem:[%s0 + $0x2e] sm:$0xff]
    %v423 = vld [vmem:[%s0 + $0x36] sm:$0xff]
    %s424 = scalar_lea.vmem %s1, 96
    %v425 = vld [vmem:[%s424] sm:$0xff]
    %v426 = vld [vmem:[%s424 + $0x8] sm:$0xff]
    %v427 = vld [vmem:[%s424 + $0x10] sm:$0xff]
    %v428 = vld [vmem:[%s424 + $0x18] sm:$0xff]
    %v429 = vpack.c.bf16 %v418, %v417
    %v430 = vpack.c.bf16 %v420, %v419
    %v431 = vpack.c.bf16 %v422, %v421
    %v432 = vpack.c.bf16 %v423, %v423
    %v437 = vunpack.c.l.b16 %v425
    %v438 = vunpack.c.h.b16 %v425
    %v439 = vunpack.c.l.b16 %v426
    %v440 = vunpack.c.h.b16 %v426
    %v441 = vunpack.c.l.b16 %v427
    %v442 = vunpack.c.h.b16 %v427
    %v443 = vunpack.c.l.b16 %v428
    %v444 = vunpack.c.h.b16 %v428
    %v445 = vpack.c.b16 %v439, %v437
    %v446 = vpack.c.b16 %v440, %v438
    %v447 = vpack.c.b16 %v443, %v441
    %v448 = vpack.c.b16 %v444, %v442
    %v454 = vsel %vm97, %v429, 0
    %v457 = vsel %vm97, %v430, 0
    %v460 = vsel %vm97, %v431, 0
    %v463 = vsel %vm97, %v432, 0
    %465 = vmatprep.subr.bf16.mxu0 0
    %466 = vmatpush1.bf16.msra.mxu0 0
    %467 = vmatprep.subr.bf16.mxu0 0
    %468 = vmatpush1.bf16.msra.mxu0 0
    %469 = vmatprep.subr.bf16.mxu0 0
    %470 = vmatpush1.bf16.msra.mxu0 0
    %471 = vmatprep.subr.bf16.mxu0 0
    %472 = vmatpush1.bf16.msra.mxu0 0
    %473 = vmatprep.subr.bf16.mxu0 0
    %474 = vmatpush1.bf16.msra.mxu0 0
    %475 = vmatprep.subr.bf16.mxu0 0
    %476 = vmatpush1.bf16.msra.mxu0 0
    %477 = vmatprep.subr.bf16.mxu0 %v448
    %478 = vmatpush1.bf16.msra.mxu0 %v447
    %479 = vmatprep.subr.bf16.mxu0 %v446
    %480 = vmatpush1.bf16.msra.mxu0 %v445
    %481 = vmatprep.subr.bf16.mxu0 0
    %482 = vmatpush2.bf16.msra.mxu0 0
    %483 = vmatprep.subr.bf16.mxu0 0
    %484 = vmatpush2.bf16.msra.mxu0 0
    %485 = vmatprep.subr.bf16.mxu0 0
    %486 = vmatpush2.bf16.msra.mxu0 0
    %487 = vmatprep.subr.bf16.mxu0 0
    %488 = vmatpush2.bf16.msra.mxu0 0
    %489 = vmatprep.subr.bf16.mxu0 0
    %490 = vmatpush2.bf16.msra.mxu0 0
    %491 = vmatprep.subr.bf16.mxu0 0
    %492 = vmatpush2.bf16.msra.mxu0 0
    %493 = vmatprep.subr.bf16.mxu0 0
    %494 = vmatpush2.bf16.msra.mxu0 0
    %495 = vmatprep.subr.bf16.mxu0 0
    %496 = vmatpush2.bf16.msra.mxu0 0
    %497 = vmatprep.mubr.bf16.mxu0 0
    %498 = vmatmul.mubr.bf16.gmra.mxu0 %v454
    %v499 = vpop.f32.mrf.mxu0
    %v500 = vadd.f32 0.0, %v499
    %v501 = vpop.f32.mrf.mxu0
    %v502 = vadd.f32 0.0, %v501
    %v503 = vpop.f32.mrf.mxu0
    %v504 = vadd.f32 0.0, %v503
    %v505 = vpop.f32.mrf.mxu0
    %v506 = vadd.f32 0.0, %v505
    %507 = vmatprep.mubr.bf16.mxu0 0
    %508 = vmatmul.mubr.bf16.gmra.mxu0 %v457
    %v509 = vpop.f32.mrf.mxu0
    %v510 = vadd.f32 0.0, %v509
    %v511 = vpop.f32.mrf.mxu0
    %v512 = vadd.f32 0.0, %v511
    %v513 = vpop.f32.mrf.mxu0
    %v514 = vadd.f32 0.0, %v513
    %v515 = vpop.f32.mrf.mxu0
    %v516 = vadd.f32 0.0, %v515
    %517 = vmatprep.mubr.bf16.mxu0 0
    %518 = vmatmul.mubr.bf16.gmra.mxu0 %v460
    %v519 = vpop.f32.mrf.mxu0
    %v520 = vadd.f32 0.0, %v519
    %v521 = vpop.f32.mrf.mxu0
    %v522 = vadd.f32 0.0, %v521
    %v523 = vpop.f32.mrf.mxu0
    %v524 = vadd.f32 0.0, %v523
    %v525 = vpop.f32.mrf.mxu0
    %v526 = vadd.f32 0.0, %v525
    %527 = vmatprep.mubr.bf16.mxu0 0
    %528 = vmatmul.mubr.bf16.gmra.mxu0 %v463
    %v529 = vpop.f32.mrf.mxu0
    %v530 = vadd.f32 0.0, %v529
    %v531 = vpop.f32.mrf.mxu0
    %v532 = vadd.f32 0.0, %v531
    %v533 = vpop.f32.mrf.mxu0
    %v534 = vpop.f32.mrf.mxu0
    %535 = vdwg.mxu0
    %v536 = vadd.f32 %v403, %v500
    %v537 = vadd.f32 %v404, %v502
    %v538 = vadd.f32 %v405, %v504
    %v539 = vadd.f32 %v406, %v506
    %v540 = vadd.f32 %v407, %v510
    %v541 = vadd.f32 %v408, %v512
    %v542 = vadd.f32 %v409, %v514
    %v543 = vadd.f32 %v410, %v516
    %v544 = vadd.f32 %v411, %v520
    %v545 = vadd.f32 %v412, %v522
    %v546 = vadd.f32 %v413, %v524
    %v547 = vadd.f32 %v414, %v526
    %v548 = vadd.f32 %v415, %v530
    %v549 = vadd.f32 %v416, %v532
    %v550 = vld [vmem:[%s0 + $0x8] sm:$0xff]
    %v551 = vld [vmem:[%s0 + $0x10] sm:$0xff]
    %v552 = vld [vmem:[%s0 + $0x18] sm:$0xff]
    %v553 = vld [vmem:[%s0 + $0x20] sm:$0xff]
    %v554 = vld [vmem:[%s0 + $0x28] sm:$0xff]
    %v555 = vld [vmem:[%s0 + $0x30] sm:$0xff]
    %v556 = vld [vmem:[%s0 + $0x38] sm:$0xff]
    %s557 = scalar_lea.vmem %s1, 128
    %v558 = vld [vmem:[%s557] sm:$0xff]
    %v559 = vld [vmem:[%s557 + $0x8] sm:$0xff]
    %v560 = vld [vmem:[%s557 + $0x10] sm:$0xff]
    %v561 = vld [vmem:[%s557 + $0x18] sm:$0xff]
    %v562 = vpack.c.bf16 %v551, %v550
    %v563 = vpack.c.bf16 %v553, %v552
    %v564 = vpack.c.bf16 %v555, %v554
    %v565 = vpack.c.bf16 %v556, %v556
    %v570 = vunpack.c.l.b16 %v558
    %v571 = vunpack.c.h.b16 %v558
    %v572 = vunpack.c.l.b16 %v559
    %v573 = vunpack.c.h.b16 %v559
    %v574 = vunpack.c.l.b16 %v560
    %v575 = vunpack.c.h.b16 %v560
    %v576 = vunpack.c.l.b16 %v561
    %v577 = vunpack.c.h.b16 %v561
    %v578 = vpack.c.b16 %v572, %v570
    %v579 = vpack.c.b16 %v573, %v571
    %v580 = vpack.c.b16 %v576, %v574
    %v581 = vpack.c.b16 %v577, %v575
    %v587 = vsel %vm97, %v562, 0
    %v590 = vsel %vm97, %v563, 0
    %v593 = vsel %vm97, %v564, 0
    %v596 = vsel %vm97, %v565, 0
    %598 = vmatprep.subr.bf16.mxu0 0
    %599 = vmatpush1.bf16.msra.mxu0 0
    %600 = vmatprep.subr.bf16.mxu0 0
    %601 = vmatpush1.bf16.msra.mxu0 0
    %602 = vmatprep.subr.bf16.mxu0 0
    %603 = vmatpush1.bf16.msra.mxu0 0
    %604 = vmatprep.subr.bf16.mxu0 0
    %605 = vmatpush1.bf16.msra.mxu0 0
    %606 = vmatprep.subr.bf16.mxu0 0
    %607 = vmatpush1.bf16.msra.mxu0 0
    %608 = vmatprep.subr.bf16.mxu0 0
    %609 = vmatpush1.bf16.msra.mxu0 0
    %610 = vmatprep.subr.bf16.mxu0 %v581
    %611 = vmatpush1.bf16.msra.mxu0 %v580
    %612 = vmatprep.subr.bf16.mxu0 %v579
    %613 = vmatpush1.bf16.msra.mxu0 %v578
    %614 = vmatprep.subr.bf16.mxu0 0
    %615 = vmatpush2.bf16.msra.mxu0 0
    %616 = vmatprep.subr.bf16.mxu0 0
    %617 = vmatpush2.bf16.msra.mxu0 0
    %618 = vmatprep.subr.bf16.mxu0 0
    %619 = vmatpush2.bf16.msra.mxu0 0
    %620 = vmatprep.subr.bf16.mxu0 0
    %621 = vmatpush2.bf16.msra.mxu0 0
    %622 = vmatprep.subr.bf16.mxu0 0
    %623 = vmatpush2.bf16.msra.mxu0 0
    %624 = vmatprep.subr.bf16.mxu0 0
    %625 = vmatpush2.bf16.msra.mxu0 0
    %626 = vmatprep.subr.bf16.mxu0 0
    %627 = vmatpush2.bf16.msra.mxu0 0
    %628 = vmatprep.subr.bf16.mxu0 0
    %629 = vmatpush2.bf16.msra.mxu0 0
    %630 = vmatprep.mubr.bf16.mxu0 0
    %631 = vmatmul.mubr.bf16.gmra.mxu0 %v587
    %v632 = vpop.f32.mrf.mxu0
    %v633 = vadd.f32 0.0, %v632
    %v634 = vpop.f32.mrf.mxu0
    %v635 = vadd.f32 0.0, %v634
    %v636 = vpop.f32.mrf.mxu0
    %v637 = vadd.f32 0.0, %v636
    %v638 = vpop.f32.mrf.mxu0
    %v639 = vadd.f32 0.0, %v638
    %640 = vmatprep.mubr.bf16.mxu0 0
    %641 = vmatmul.mubr.bf16.gmra.mxu0 %v590
    %v642 = vpop.f32.mrf.mxu0
    %v643 = vadd.f32 0.0, %v642
    %v644 = vpop.f32.mrf.mxu0
    %v645 = vadd.f32 0.0, %v644
    %v646 = vpop.f32.mrf.mxu0
    %v647 = vadd.f32 0.0, %v646
    %v648 = vpop.f32.mrf.mxu0
    %v649 = vadd.f32 0.0, %v648
    %650 = vmatprep.mubr.bf16.mxu0 0
    %651 = vmatmul.mubr.bf16.gmra.mxu0 %v593
    %v652 = vpop.f32.mrf.mxu0
    %v653 = vadd.f32 0.0, %v652
    %v654 = vpop.f32.mrf.mxu0
    %v655 = vadd.f32 0.0, %v654
    %v656 = vpop.f32.mrf.mxu0
    %v657 = vadd.f32 0.0, %v656
    %v658 = vpop.f32.mrf.mxu0
    %v659 = vadd.f32 0.0, %v658
    %660 = vmatprep.mubr.bf16.mxu0 0
    %661 = vmatmul.mubr.bf16.gmra.mxu0 %v596
    %v662 = vpop.f32.mrf.mxu0
    %v663 = vadd.f32 0.0, %v662
    %v664 = vpop.f32.mrf.mxu0
    %v665 = vadd.f32 0.0, %v664
    %v666 = vpop.f32.mrf.mxu0
    %v667 = vpop.f32.mrf.mxu0
    %668 = vdwg.mxu0
    %v669 = vadd.f32 %v536, %v633
    %v670 = vadd.f32 %v537, %v635
    %v671 = vadd.f32 %v538, %v637
    %v672 = vadd.f32 %v539, %v639
    %v673 = vadd.f32 %v540, %v643
    %v674 = vadd.f32 %v541, %v645
    %v675 = vadd.f32 %v542, %v647
    %v676 = vadd.f32 %v543, %v649
    %v677 = vadd.f32 %v544, %v653
    %v678 = vadd.f32 %v545, %v655
    %v679 = vadd.f32 %v546, %v657
    %v680 = vadd.f32 %v547, %v659
    %v681 = vadd.f32 %v548, %v663
    %v682 = vadd.f32 %v549, %v665
    %v683 = vld [vmem:[%s2] sm:$0x3]
    %v685 = vlaneseq
    %v686 = vshrl.u32 %v685, 7
    %v687 = vsub.s32 0, %v686
    %v688 = vrot.slane %v683, %v687
    %v689 = vlaneseq
    %v690 = vshrl.u32 %v689, 7
    %v691 = vsub.s32 1, %v690
    %v692 = vrot.slane %v683, %v691
    %v695 = vadd.f32 %v669, %v688
    %v696 = vadd.f32 %v670, %v692
    %v697 = vadd.f32 %v671, %v688
    %v698 = vadd.f32 %v672, %v692
    %v699 = vadd.f32 %v673, %v688
    %v700 = vadd.f32 %v674, %v692
    %v701 = vadd.f32 %v675, %v688
    %v702 = vadd.f32 %v676, %v692
    %v703 = vadd.f32 %v677, %v688
    %v704 = vadd.f32 %v678, %v692
    %v705 = vadd.f32 %v679, %v688
    %v706 = vadd.f32 %v680, %v692
    %v707 = vadd.f32 %v681, %v688
    %v708 = vadd.f32 %v682, %v692
    %v709 = vld [vmem:[%s3] sm:$0xf]
    %v710 = vld [vmem:[%s3 + $0x4] sm:$0xf]
    %v711 = vld [vmem:[%s3 + $0x8] sm:$0xf]
    %v712 = vld [vmem:[%s3 + $0xc] sm:$0x3]
    %v713 = vld [vmem:[%s4] sm:$0xf]
    %v714 = vld [vmem:[%s4 + $0x4] sm:$0xf]
    %v715 = vld [vmem:[%s4 + $0x8] sm:$0xf]
    %v716 = vld [vmem:[%s4 + $0xc] sm:$0xf]
    %v717 = vld [vmem:[%s4 + $0x10] sm:$0xf]
    %v718 = vld [vmem:[%s4 + $0x14] sm:$0xf]
    %v719 = vld [vmem:[%s4 + $0x18] sm:$0xf]
    %v720 = vld [vmem:[%s4 + $0x1c] sm:$0xf]
    %v721 = vld [vmem:[%s4 + $0x20] sm:$0xf]
    %v722 = vld [vmem:[%s4 + $0x24] sm:$0xf]
    %v723 = vld [vmem:[%s4 + $0x28] sm:$0xf]
    %v724 = vld [vmem:[%s4 + $0x2c] sm:$0xf]
    %v725 = vld [vmem:[%s4 + $0x30] sm:$0xf]
    %v726 = vld [vmem:[%s4 + $0x34] sm:$0xf]
    %v727 = vld [vmem:[%s4 + $0x38] sm:$0xf]
    %v728 = vld [vmem:[%s4 + $0x3c] sm:$0xf]
    %v729 = vld [vmem:[%s4 + $0x40] sm:$0xf]
    %v730 = vld [vmem:[%s4 + $0x44] sm:$0xf]
    %v731 = vld [vmem:[%s4 + $0x48] sm:$0xf]
    %v732 = vld [vmem:[%s4 + $0x4c] sm:$0xf]
    %v733 = vld [vmem:[%s4 + $0x50] sm:$0xf]
    %v734 = vpack.c.bf16 %v697, %v695
    %v735 = vpack.c.bf16 %v698, %v696
    %v736 = vpack.c.bf16 %v701, %v699
    %v737 = vpack.c.bf16 %v702, %v700
    %v738 = vpack.c.bf16 %v705, %v703
    %v739 = vpack.c.bf16 %v706, %v704
    %v740 = vpack.c.bf16 %v707, %v707
    %v741 = vpack.c.bf16 %v708, %v708
    %v763 = vunpack.c.l.b16 %v713
    %v764 = vunpack.c.l.b16 %v714
    %v765 = vunpack.c.l.b16 %v715
    %v766 = vunpack.c.l.b16 %v716
    %v767 = vunpack.c.l.b16 %v717
    %v768 = vunpack.c.l.b16 %v718
    %v769 = vunpack.c.l.b16 %v719
    %v770 = vunpack.c.l.b16 %v720
    %v771 = vunpack.c.l.b16 %v721
    %v772 = vunpack.c.l.b16 %v722
    %v773 = vunpack.c.l.b16 %v723
    %v774 = vunpack.c.l.b16 %v724
    %v775 = vunpack.c.l.b16 %v725
    %v776 = vunpack.c.l.b16 %v726
    %v777 = vunpack.c.l.b16 %v727
    %v778 = vunpack.c.l.b16 %v728
    %v779 = vunpack.c.l.b16 %v729
    %v780 = vunpack.c.l.b16 %v730
    %v781 = vunpack.c.l.b16 %v731
    %v782 = vunpack.c.l.b16 %v732
    %v783 = vunpack.c.l.b16 %v733
    %v784 = vpack.c.b16 %v764, %v763
    %v785 = vpack.c.b16 %v766, %v765
    %v786 = vpack.c.b16 %v768, %v767
    %v787 = vpack.c.b16 %v770, %v769
    %v788 = vpack.c.b16 %v772, %v771
    %v789 = vpack.c.b16 %v774, %v773
    %v790 = vpack.c.b16 %v776, %v775
    %v791 = vpack.c.b16 %v778, %v777
    %v792 = vpack.c.b16 %v780, %v779
    %v793 = vpack.c.b16 %v782, %v781
    %v794 = vpack.c.b16 %v783, %v783
    %vm805 = vcmask 326656
    %v807 = vsel %vm805, %v735, 0
    %v810 = vsel %vm805, %v737, 0
    %v813 = vsel %vm805, %v739, 0
    %v816 = vsel %vm805, %v741, 0
    %vm818 = vcmask 1043456
    %v820 = vsel %vm818, %v794, 0
    %822 = vmatprep.subr.bf16.mxu0 0
    %823 = vmatpush1.bf16.msra.mxu0 %v791
    %824 = vmatprep.subr.bf16.mxu0 0
    %825 = vmatpush1.bf16.msra.mxu0 %v790
    %826 = vmatprep.subr.bf16.mxu0 0
    %827 = vmatpush1.bf16.msra.mxu0 %v789
    %828 = vmatprep.subr.bf16.mxu0 0
    %829 = vmatpush1.bf16.msra.mxu0 %v788
    %830 = vmatprep.subr.bf16.mxu0 0
    %831 = vmatpush1.bf16.msra.mxu0 %v787
    %832 = vmatprep.subr.bf16.mxu0 0
    %833 = vmatpush1.bf16.msra.mxu0 %v786
    %834 = vmatprep.subr.bf16.mxu0 0
    %835 = vmatpush1.bf16.msra.mxu0 %v785
    %836 = vmatprep.subr.bf16.mxu0 0
    %837 = vmatpush1.bf16.msra.mxu0 %v784
    %838 = vmatprep.subr.bf16.mxu0 0
    %839 = vmatpush2.bf16.msra.mxu0 0
    %840 = vmatprep.subr.bf16.mxu0 0
    %841 = vmatpush2.bf16.msra.mxu0 0
    %842 = vmatprep.subr.bf16.mxu0 0
    %843 = vmatpush2.bf16.msra.mxu0 0
    %844 = vmatprep.subr.bf16.mxu0 0
    %845 = vmatpush2.bf16.msra.mxu0 0
    %846 = vmatprep.subr.bf16.mxu0 0
    %847 = vmatpush2.bf16.msra.mxu0 0
    %848 = vmatprep.subr.bf16.mxu0 0
    %849 = vmatpush2.bf16.msra.mxu0 %v820
    %850 = vmatprep.subr.bf16.mxu0 0
    %851 = vmatpush2.bf16.msra.mxu0 %v793
    %852 = vmatprep.subr.bf16.mxu0 0
    %853 = vmatpush2.bf16.msra.mxu0 %v792
    %854 = vmatprep.mubr.bf16.mxu0 %v807
    %855 = vmatmul.mubr.bf16.gmra.mxu0 %v734
    %v856 = vpop.f32.mrf.mxu0
    %v857 = vadd.f32 0.0, %v856
    %v858 = vpop.f32.mrf.mxu0
    %v859 = vpop.f32.mrf.mxu0
    %v860 = vadd.f32 0.0, %v859
    %v861 = vpop.f32.mrf.mxu0
    %862 = vmatprep.mubr.bf16.mxu0 %v810
    %863 = vmatmul.mubr.bf16.gmra.mxu0 %v736
    %v864 = vpop.f32.mrf.mxu0
    %v865 = vadd.f32 0.0, %v864
    %v866 = vpop.f32.mrf.mxu0
    %v867 = vpop.f32.mrf.mxu0
    %v868 = vadd.f32 0.0, %v867
    %v869 = vpop.f32.mrf.mxu0
    %870 = vmatprep.mubr.bf16.mxu0 %v813
    %871 = vmatmul.mubr.bf16.gmra.mxu0 %v738
    %v872 = vpop.f32.mrf.mxu0
    %v873 = vadd.f32 0.0, %v872
    %v874 = vpop.f32.mrf.mxu0
    %v875 = vpop.f32.mrf.mxu0
    %v876 = vadd.f32 0.0, %v875
    %v877 = vpop.f32.mrf.mxu0
    %878 = vmatprep.mubr.bf16.mxu0 %v816
    %879 = vmatmul.mubr.bf16.gmra.mxu0 %v740
    %v880 = vpop.f32.mrf.mxu0
    %v881 = vadd.f32 0.0, %v880
    %v882 = vpop.f32.mrf.mxu0
    %v883 = vpop.f32.mrf.mxu0
    %v884 = vpop.f32.mrf.mxu0
    %885 = vdwg.mxu0
    %v886 = vpack.c.bf16 %v860, %v857
    %v887 = vpack.c.bf16 %v868, %v865
    %v888 = vpack.c.bf16 %v876, %v873
    %v889 = vpack.c.bf16 %v881, %v881
    %v894 = vunpack.c.l.b16 %v709
    %v895 = vunpack.c.l.b16 %v710
    %v896 = vunpack.c.l.b16 %v711
    %v897 = vunpack.c.l.b16 %v712
    %v898 = vpack.c.b16 %v895, %v894
    %v899 = vpack.c.b16 %v897, %v896
    %vm900 = vcmask 457728
    %v902 = vsel %vm900, %v898, 0
    %v905 = vsel %vm900, %v899, 0
    %v908 = vsel %vm818, %v889, 0
    %910 = vmatprep.subr.bf16.mxu0 0
    %911 = vmatpush1.bf16.msra.mxu0 0
    %912 = vmatprep.subr.bf16.mxu0 0
    %913 = vmatpush1.bf16.msra.mxu0 0
    %914 = vmatprep.subr.bf16.mxu0 0
    %915 = vmatpush1.bf16.msra.mxu0 0
    %916 = vmatprep.subr.bf16.mxu0 0
    %917 = vmatpush1.bf16.msra.mxu0 0
    %918 = vmatprep.subr.bf16.mxu0 0
    %919 = vmatpush1.bf16.msra.mxu0 %v908
    %920 = vmatprep.subr.bf16.mxu0 0
    %921 = vmatpush1.bf16.msra.mxu0 %v888
    %922 = vmatprep.subr.bf16.mxu0 0
    %923 = vmatpush1.bf16.msra.mxu0 %v887
    %924 = vmatprep.subr.bf16.mxu0 0
    %925 = vmatpush1.bf16.msra.mxu0 %v886
    %926 = vmatprep.subr.bf16.mxu0 0
    %927 = vmatpush2.bf16.msra.mxu0 0
    %928 = vmatprep.subr.bf16.mxu0 0
    %929 = vmatpush2.bf16.msra.mxu0 0
    %930 = vmatprep.subr.bf16.mxu0 0
    %931 = vmatpush2.bf16.msra.mxu0 0
    %932 = vmatprep.subr.bf16.mxu0 0
    %933 = vmatpush2.bf16.msra.mxu0 0
    %934 = vmatprep.subr.bf16.mxu0 0
    %935 = vmatpush2.bf16.msra.mxu0 0
    %936 = vmatprep.subr.bf16.mxu0 0
    %937 = vmatpush2.bf16.msra.mxu0 0
    %938 = vmatprep.subr.bf16.mxu0 0
    %939 = vmatpush2.bf16.msra.mxu0 0
    %940 = vmatprep.subr.bf16.mxu0 0
    %941 = vmatpush2.bf16.msra.mxu0 0
    %942 = vmatprep.mubr.bf16.mxu0 0
    %943 = vmatmul.mubr.bf16.gmra.mxu0 %v902
    %v944 = vpop.f32.mrf.mxu0
    %v945 = vadd.f32 0.0, %v944
    %v946 = vpop.f32.mrf.mxu0
    %v947 = vpop.f32.mrf.mxu0
    %v948 = vadd.f32 0.0, %v947
    %v949 = vpop.f32.mrf.mxu0
    %950 = vmatprep.mubr.bf16.mxu0 0
    %951 = vmatmul.mubr.bf16.gmra.mxu0 %v905
    %v952 = vpop.f32.mrf.mxu0
    %v953 = vadd.f32 0.0, %v952
    %v954 = vpop.f32.mrf.mxu0
    %v955 = vpop.f32.mrf.mxu0
    %v956 = vadd.f32 0.0, %v955
    %v957 = vpop.f32.mrf.mxu0
    %958 = vdwg.mxu0
    %v959 = vsub.f32 0.0, %v945
    %v960 = vsub.f32 0.0, %v948
    %v961 = vsub.f32 0.0, %v953
    %v962 = vsub.f32 0.0, %v956
    %v963 = vmul.f32 %v959, 1.442695
    %v964 = vpow.pop %v963
    %v965 = vmul.f32 %v960, 1.442695
    %v966 = vpow.pop %v965
    %v967 = vmul.f32 %v961, 1.442695
    %v968 = vpow.pop %v967
    %v969 = vmul.f32 %v962, 1.442695
    %v970 = vpow.pop %v969
    %v971 = vadd.f32 %v964, 1.0
    %v972 = vadd.f32 %v966, 1.0
    %v973 = vadd.f32 %v968, 1.0
    %v974 = vadd.f32 %v970, 1.0
    %v975 = vrcp.pop %v971
    %v976 = vrcp.pop %v972
    %v977 = vrcp.pop %v973
    %v978 = vrcp.pop %v974
    %vm979 = vcmask 687104
    %980 = vst.msk [vmem:[#allocation2] sm:$0xff] %vm979, %v975
    %981 = vst.msk [vmem:[#allocation2 + $0x8] sm:$0xff] %vm979, %v976
    %982 = vst.msk [vmem:[#allocation2 + $0x10] sm:$0xff] %vm979, %v977
    %vm983 = vcmask 683008
    %984 = vst.msk [vmem:[#allocation2 + $0x18] sm:$0xf] %vm983, %v978
    %v985 = vld [vmem:[#allocation2] sm:$0xff]
    %v986 = vld [vmem:[#allocation2 + $0x8] sm:$0xff]
    %v987 = vld [vmem:[#allocation2 + $0x10] sm:$0xf]
    %v988 = vld [vmem:[%s5] sm:$0xff]
    %v989 = vld [vmem:[%s5 + $0x8] sm:$0xff]
    %v990 = vld [vmem:[%s5 + $0x10] sm:$0xff]
    %v991 = vld [vmem:[%s5 + $0x18] sm:$0xff]
    %v992 = vld [vmem:[%s5 + $0x20] sm:$0xff]
    %v993 = vld [vmem:[%s5 + $0x28] sm:$0xff]
    %v994 = vld [vmem:[%s5 + $0x30] sm:$0xff]
    %v995 = vld [vmem:[%s5 + $0x38] sm:$0xff]
    %v996 = vld [vmem:[%s5 + $0x40] sm:$0xff]
    %v997 = vld [vmem:[%s5 + $0x48] sm:$0xff]
    %v998 = vld [vmem:[%s5 + $0x50] sm:$0x33]
    %v999 = vpack.c.bf16 %v986, %v985
    %v1000 = vpack.c.bf16 %v987, %v987
    %v1001 = vld [vmem:[#allocation2 + $0x2] sm:$0xff]
    %v1002 = vld [vmem:[#allocation2 + $0xa] sm:$0xff]
    %v1003 = vld [vmem:[#allocation2 + $0x12] sm:$0xf]
    %s1004 = scalar_lea.vmem %s5, 88
    %v1005 = vld [vmem:[%s1004] sm:$0xff]
    %v1006 = vld [vmem:[%s1004 + $0x8] sm:$0xff]
    %v1007 = vld [vmem:[%s1004 + $0x10] sm:$0xff]
    %v1008 = vld [vmem:[%s1004 + $0x18] sm:$0xff]
    %v1009 = vld [vmem:[%s1004 + $0x20] sm:$0xff]
    %v1010 = vld [vmem:[%s1004 + $0x28] sm:$0xff]
    %v1011 = vld [vmem:[%s1004 + $0x30] sm:$0xff]
    %v1012 = vld [vmem:[%s1004 + $0x38] sm:$0xff]
    %v1013 = vld [vmem:[%s1004 + $0x40] sm:$0xff]
    %v1014 = vld [vmem:[%s1004 + $0x48] sm:$0xff]
    %v1015 = vld [vmem:[%s1004 + $0x50] sm:$0x33]
    %v1016 = vpack.c.bf16 %v1002, %v1001
    %v1017 = vpack.c.bf16 %v1003, %v1003
    %v1029 = vunpack.c.l.b16 %v1005
    %v1030 = vunpack.c.h.b16 %v1005
    %v1031 = vunpack.c.l.b16 %v1006
    %v1032 = vunpack.c.h.b16 %v1006
    %v1033 = vunpack.c.l.b16 %v1007
    %v1034 = vunpack.c.h.b16 %v1007
    %v1035 = vunpack.c.l.b16 %v1008
    %v1036 = vunpack.c.h.b16 %v1008
    %v1037 = vunpack.c.l.b16 %v1009
    %v1038 = vunpack.c.h.b16 %v1009
    %v1039 = vunpack.c.l.b16 %v1010
    %v1040 = vunpack.c.h.b16 %v1010
    %v1041 = vunpack.c.l.b16 %v1011
    %v1042 = vunpack.c.h.b16 %v1011
    %v1043 = vunpack.c.l.b16 %v1012
    %v1044 = vunpack.c.h.b16 %v1012
    %v1045 = vunpack.c.l.b16 %v1013
    %v1046 = vunpack.c.h.b16 %v1013
    %v1047 = vunpack.c.l.b16 %v1014
    %v1048 = vunpack.c.h.b16 %v1014
    %v1049 = vunpack.c.l.b16 %v1015
    %v1050 = vunpack.c.h.b16 %v1015
    %v1051 = vpack.c.b16 %v1031, %v1029
    %v1052 = vpack.c.b16 %v1032, %v1030
    %v1053 = vpack.c.b16 %v1035, %v1033
    %v1054 = vpack.c.b16 %v1036, %v1034
    %v1055 = vpack.c.b16 %v1039, %v1037
    %v1056 = vpack.c.b16 %v1040, %v1038
    %v1057 = vpack.c.b16 %v1043, %v1041
    %v1058 = vpack.c.b16 %v1044, %v1042
    %v1059 = vpack.c.b16 %v1047, %v1045
    %v1060 = vpack.c.b16 %v1048, %v1046
    %v1061 = vpack.c.b16 %v1049, %v1049
    %v1062 = vpack.c.b16 %v1050, %v1050
    %v1074 = vsel %vm979, %v1016, 0
    %v1077 = vsel %vm979, %v1017, 0
    %vm1079 = vcmask 1041408
    %v1081 = vsel %vm1079, %v1061, 0
    %v1084 = vsel %vm1079, %v1062, 0
    %1086 = vmatprep.subr.bf16.mxu0 0
    %1087 = vmatpush1.bf16.msra.mxu0 0
    %1088 = vmatprep.subr.bf16.mxu0 0
    %1089 = vmatpush1.bf16.msra.mxu0 0
    %1090 = vmatprep.subr.bf16.mxu0 %v1084
    %1091 = vmatpush1.bf16.msra.mxu0 %v1081
    %1092 = vmatprep.subr.bf16.mxu0 %v1060
    %1093 = vmatpush1.bf16.msra.mxu0 %v1059
    %1094 = vmatprep.subr.bf16.mxu0 %v1058
    %1095 = vmatpush1.bf16.msra.mxu0 %v1057
    %1096 = vmatprep.subr.bf16.mxu0 %v1056
    %1097 = vmatpush1.bf16.msra.mxu0 %v1055
    %1098 = vmatprep.subr.bf16.mxu0 %v1054
    %1099 = vmatpush1.bf16.msra.mxu0 %v1053
    %1100 = vmatprep.subr.bf16.mxu0 %v1052
    %1101 = vmatpush1.bf16.msra.mxu0 %v1051
    %1102 = vmatprep.subr.bf16.mxu0 0
    %1103 = vmatpush2.bf16.msra.mxu0 0
    %1104 = vmatprep.subr.bf16.mxu0 0
    %1105 = vmatpush2.bf16.msra.mxu0 0
    %1106 = vmatprep.subr.bf16.mxu0 0
    %1107 = vmatpush2.bf16.msra.mxu0 0
    %1108 = vmatprep.subr.bf16.mxu0 0
    %1109 = vmatpush2.bf16.msra.mxu0 0
    %1110 = vmatprep.subr.bf16.mxu0 0
    %1111 = vmatpush2.bf16.msra.mxu0 0
    %1112 = vmatprep.subr.bf16.mxu0 0
    %1113 = vmatpush2.bf16.msra.mxu0 0
    %1114 = vmatprep.subr.bf16.mxu0 0
    %1115 = vmatpush2.bf16.msra.mxu0 0
    %1116 = vmatprep.subr.bf16.mxu0 0
    %1117 = vmatpush2.bf16.msra.mxu0 0
    %1118 = vmatprep.mubr.bf16.mxu0 0
    %1119 = vmatmul.mubr.bf16.gmra.mxu0 %v1074
    %v1120 = vpop.f32.mrf.mxu0
    %v1121 = vadd.f32 0.0, %v1120
    %v1122 = vpop.f32.mrf.mxu0
    %v1123 = vadd.f32 0.0, %v1122
    %v1124 = vpop.f32.mrf.mxu0
    %v1125 = vadd.f32 0.0, %v1124
    %v1126 = vpop.f32.mrf.mxu0
    %v1127 = vadd.f32 0.0, %v1126
    %1128 = vmatprep.mubr.bf16.mxu0 0
    %1129 = vmatmul.mubr.bf16.gmra.mxu0 %v1077
    %v1130 = vpop.f32.mrf.mxu0
    %v1131 = vadd.f32 0.0, %v1130
    %v1132 = vpop.f32.mrf.mxu0
    %v1133 = vadd.f32 0.0, %v1132
    %v1134 = vpop.f32.mrf.mxu0
    %v1135 = vpop.f32.mrf.mxu0
    %1136 = vdwg.mxu0
    %v1148 = vunpack.c.l.b16 %v988
    %v1149 = vunpack.c.h.b16 %v988
    %v1150 = vunpack.c.l.b16 %v989
    %v1151 = vunpack.c.h.b16 %v989
    %v1152 = vunpack.c.l.b16 %v990
    %v1153 = vunpack.c.h.b16 %v990
    %v1154 = vunpack.c.l.b16 %v991
    %v1155 = vunpack.c.h.b16 %v991
    %v1156 = vunpack.c.l.b16 %v992
    %v1157 = vunpack.c.h.b16 %v992
    %v1158 = vunpack.c.l.b16 %v993
    %v1159 = vunpack.c.h.b16 %v993
    %v1160 = vunpack.c.l.b16 %v994
    %v1161 = vunpack.c.h.b16 %v994
    %v1162 = vunpack.c.l.b16 %v995
    %v1163 = vunpack.c.h.b16 %v995
    %v1164 = vunpack.c.l.b16 %v996
    %v1165 = vunpack.c.h.b16 %v996
    %v1166 = vunpack.c.l.b16 %v997
    %v1167 = vunpack.c.h.b16 %v997
    %v1168 = vunpack.c.l.b16 %v998
    %v1169 = vunpack.c.h.b16 %v998
    %v1170 = vpack.c.b16 %v1150, %v1148
    %v1171 = vpack.c.b16 %v1151, %v1149
    %v1172 = vpack.c.b16 %v1154, %v1152
    %v1173 = vpack.c.b16 %v1155, %v1153
    %v1174 = vpack.c.b16 %v1158, %v1156
    %v1175 = vpack.c.b16 %v1159, %v1157
    %v1176 = vpack.c.b16 %v1162, %v1160
    %v1177 = vpack.c.b16 %v1163, %v1161
    %v1178 = vpack.c.b16 %v1166, %v1164
    %v1179 = vpack.c.b16 %v1167, %v1165
    %v1180 = vpack.c.b16 %v1168, %v1168
    %v1181 = vpack.c.b16 %v1169, %v1169
    %v1193 = vsel %vm979, %v999, 0
    %v1196 = vsel %vm979, %v1000, 0
    %v1199 = vsel %vm1079, %v1180, 0
    %v1202 = vsel %vm1079, %v1181, 0
    %1204 = vmatprep.subr.bf16.mxu0 0
    %1205 = vmatpush1.bf16.msra.mxu0 0
    %1206 = vmatprep.subr.bf16.mxu0 0
    %1207 = vmatpush1.bf16.msra.mxu0 0
    %1208 = vmatprep.subr.bf16.mxu0 %v1202
    %1209 = vmatpush1.bf16.msra.mxu0 %v1199
    %1210 = vmatprep.subr.bf16.mxu0 %v1179
    %1211 = vmatpush1.bf16.msra.mxu0 %v1178
    %1212 = vmatprep.subr.bf16.mxu0 %v1177
    %1213 = vmatpush1.bf16.msra.mxu0 %v1176
    %1214 = vmatprep.subr.bf16.mxu0 %v1175
    %1215 = vmatpush1.bf16.msra.mxu0 %v1174
    %1216 = vmatprep.subr.bf16.mxu0 %v1173
    %1217 = vmatpush1.bf16.msra.mxu0 %v1172
    %1218 = vmatprep.subr.bf16.mxu0 %v1171
    %1219 = vmatpush1.bf16.msra.mxu0 %v1170
    %1220 = vmatprep.subr.bf16.mxu0 0
    %1221 = vmatpush2.bf16.msra.mxu0 0
    %1222 = vmatprep.subr.bf16.mxu0 0
    %1223 = vmatpush2.bf16.msra.mxu0 0
    %1224 = vmatprep.subr.bf16.mxu0 0
    %1225 = vmatpush2.bf16.msra.mxu0 0
    %1226 = vmatprep.subr.bf16.mxu0 0
    %1227 = vmatpush2.bf16.msra.mxu0 0
    %1228 = vmatprep.subr.bf16.mxu0 0
    %1229 = vmatpush2.bf16.msra.mxu0 0
    %1230 = vmatprep.subr.bf16.mxu0 0
    %1231 = vmatpush2.bf16.msra.mxu0 0
    %1232 = vmatprep.subr.bf16.mxu0 0
    %1233 = vmatpush2.bf16.msra.mxu0 0
    %1234 = vmatprep.subr.bf16.mxu0 0
    %1235 = vmatpush2.bf16.msra.mxu0 0
    %1236 = vmatprep.mubr.bf16.mxu0 0
    %1237 = vmatmul.mubr.bf16.gmra.mxu0 %v1193
    %v1238 = vpop.f32.mrf.mxu0
    %v1239 = vadd.f32 %v1121, %v1238
    %v1240 = vpop.f32.mrf.mxu0
    %v1241 = vadd.f32 %v1123, %v1240
    %v1242 = vpop.f32.mrf.mxu0
    %v1243 = vadd.f32 %v1125, %v1242
    %v1244 = vpop.f32.mrf.mxu0
    %v1245 = vadd.f32 %v1127, %v1244
    %1246 = vmatprep.mubr.bf16.mxu0 0
    %1247 = vmatmul.mubr.bf16.gmra.mxu0 %v1196
    %v1248 = vpop.f32.mrf.mxu0
    %v1249 = vadd.f32 %v1131, %v1248
    %v1250 = vpop.f32.mrf.mxu0
    %v1251 = vadd.f32 %v1133, %v1250
    %v1252 = vpop.f32.mrf.mxu0
    %v1253 = vpop.f32.mrf.mxu0
    %1254 = vdwg.mxu0
    %v1255 = vld [vmem:[#allocation2 + $0x4] sm:$0xff]
    %v1256 = vld [vmem:[#allocation2 + $0xc] sm:$0xff]
    %v1257 = vld [vmem:[#allocation2 + $0x14] sm:$0xf]
    %s1258 = scalar_lea.vmem %s5, 176
    %v1259 = vld [vmem:[%s1258] sm:$0xff]
    %v1260 = vld [vmem:[%s1258 + $0x8] sm:$0xff]
    %v1261 = vld [vmem:[%s1258 + $0x10] sm:$0xff]
    %v1262 = vld [vmem:[%s1258 + $0x18] sm:$0xff]
    %v1263 = vld [vmem:[%s1258 + $0x20] sm:$0xff]
    %v1264 = vld [vmem:[%s1258 + $0x28] sm:$0xff]
    %v1265 = vld [vmem:[%s1258 + $0x30] sm:$0xff]
    %v1266 = vld [vmem:[%s1258 + $0x38] sm:$0xff]
    %v1267 = vld [vmem:[%s1258 + $0x40] sm:$0xff]
    %v1268 = vld [vmem:[%s1258 + $0x48] sm:$0xff]
    %v1269 = vld [vmem:[%s1258 + $0x50] sm:$0x33]
    %v1270 = vpack.c.bf16 %v1256, %v1255
    %v1271 = vpack.c.bf16 %v1257, %v1257
    %v1283 = vunpack.c.l.b16 %v1259
    %v1284 = vunpack.c.h.b16 %v1259
    %v1285 = vunpack.c.l.b16 %v1260
    %v1286 = vunpack.c.h.b16 %v1260
    %v1287 = vunpack.c.l.b16 %v1261
    %v1288 = vunpack.c.h.b16 %v1261
    %v1289 = vunpack.c.l.b16 %v1262
    %v1290 = vunpack.c.h.b16 %v1262
    %v1291 = vunpack.c.l.b16 %v1263
    %v1292 = vunpack.c.h.b16 %v1263
    %v1293 = vunpack.c.l.b16 %v1264
    %v1294 = vunpack.c.h.b16 %v1264
    %v1295 = vunpack.c.l.b16 %v1265
    %v1296 = vunpack.c.h.b16 %v1265
    %v1297 = vunpack.c.l.b16 %v1266
    %v1298 = vunpack.c.h.b16 %v1266
    %v1299 = vunpack.c.l.b16 %v1267
    %v1300 = vunpack.c.h.b16 %v1267
    %v1301 = vunpack.c.l.b16 %v1268
    %v1302 = vunpack.c.h.b16 %v1268
    %v1303 = vunpack.c.l.b16 %v1269
    %v1304 = vunpack.c.h.b16 %v1269
    %v1305 = vpack.c.b16 %v1285, %v1283
    %v1306 = vpack.c.b16 %v1286, %v1284
    %v1307 = vpack.c.b16 %v1289, %v1287
    %v1308 = vpack.c.b16 %v1290, %v1288
    %v1309 = vpack.c.b16 %v1293, %v1291
    %v1310 = vpack.c.b16 %v1294, %v1292
    %v1311 = vpack.c.b16 %v1297, %v1295
    %v1312 = vpack.c.b16 %v1298, %v1296
    %v1313 = vpack.c.b16 %v1301, %v1299
    %v1314 = vpack.c.b16 %v1302, %v1300
    %v1315 = vpack.c.b16 %v1303, %v1303
    %v1316 = vpack.c.b16 %v1304, %v1304
    %v1328 = vsel %vm979, %v1270, 0
    %v1331 = vsel %vm979, %v1271, 0
    %v1334 = vsel %vm1079, %v1315, 0
    %v1337 = vsel %vm1079, %v1316, 0
    %1339 = vmatprep.subr.bf16.mxu0 0
    %1340 = vmatpush1.bf16.msra.mxu0 0
    %1341 = vmatprep.subr.bf16.mxu0 0
    %1342 = vmatpush1.bf16.msra.mxu0 0
    %1343 = vmatprep.subr.bf16.mxu0 %v1337
    %1344 = vmatpush1.bf16.msra.mxu0 %v1334
    %1345 = vmatprep.subr.bf16.mxu0 %v1314
    %1346 = vmatpush1.bf16.msra.mxu0 %v1313
    %1347 = vmatprep.subr.bf16.mxu0 %v1312
    %1348 = vmatpush1.bf16.msra.mxu0 %v1311
    %1349 = vmatprep.subr.bf16.mxu0 %v1310
    %1350 = vmatpush1.bf16.msra.mxu0 %v1309
    %1351 = vmatprep.subr.bf16.mxu0 %v1308
    %1352 = vmatpush1.bf16.msra.mxu0 %v1307
    %1353 = vmatprep.subr.bf16.mxu0 %v1306
    %1354 = vmatpush1.bf16.msra.mxu0 %v1305
    %1355 = vmatprep.subr.bf16.mxu0 0
    %1356 = vmatpush2.bf16.msra.mxu0 0
    %1357 = vmatprep.subr.bf16.mxu0 0
    %1358 = vmatpush2.bf16.msra.mxu0 0
    %1359 = vmatprep.subr.bf16.mxu0 0
    %1360 = vmatpush2.bf16.msra.mxu0 0
    %1361 = vmatprep.subr.bf16.mxu0 0
    %1362 = vmatpush2.bf16.msra.mxu0 0
    %1363 = vmatprep.subr.bf16.mxu0 0
    %1364 = vmatpush2.bf16.msra.mxu0 0
    %1365 = vmatprep.subr.bf16.mxu0 0
    %1366 = vmatpush2.bf16.msra.mxu0 0
    %1367 = vmatprep.subr.bf16.mxu0 0
    %1368 = vmatpush2.bf16.msra.mxu0 0
    %1369 = vmatprep.subr.bf16.mxu0 0
    %1370 = vmatpush2.bf16.msra.mxu0 0
    %1371 = vmatprep.mubr.bf16.mxu0 0
    %1372 = vmatmul.mubr.bf16.gmra.mxu0 %v1328
    %v1373 = vpop.f32.mrf.mxu0
    %v1374 = vadd.f32 0.0, %v1373
    %v1375 = vpop.f32.mrf.mxu0
    %v1376 = vadd.f32 0.0, %v1375
    %v1377 = vpop.f32.mrf.mxu0
    %v1378 = vadd.f32 0.0, %v1377
    %v1379 = vpop.f32.mrf.mxu0
    %v1380 = vadd.f32 0.0, %v1379
    %1381 = vmatprep.mubr.bf16.mxu0 0
    %1382 = vmatmul.mubr.bf16.gmra.mxu0 %v1331
    %v1383 = vpop.f32.mrf.mxu0
    %v1384 = vadd.f32 0.0, %v1383
    %v1385 = vpop.f32.mrf.mxu0
    %v1386 = vadd.f32 0.0, %v1385
    %v1387 = vpop.f32.mrf.mxu0
    %v1388 = vpop.f32.mrf.mxu0
    %1389 = vdwg.mxu0
    %v1390 = vadd.f32 %v1239, %v1374
    %v1391 = vadd.f32 %v1241, %v1376
    %v1392 = vadd.f32 %v1243, %v1378
    %v1393 = vadd.f32 %v1245, %v1380
    %v1394 = vadd.f32 %v1249, %v1384
    %v1395 = vadd.f32 %v1251, %v1386
    %v1396 = vld [vmem:[#allocation2 + $0x6] sm:$0xff]
    %v1397 = vld [vmem:[#allocation2 + $0xe] sm:$0xff]
    %v1398 = vld [vmem:[#allocation2 + $0x16] sm:$0xf]
    %s1399 = scalar_lea.vmem %s5, 264
    %v1400 = vld [vmem:[%s1399] sm:$0xff]
    %v1401 = vld [vmem:[%s1399 + $0x8] sm:$0xff]
    %v1402 = vld [vmem:[%s1399 + $0x10] sm:$0xff]
    %v1403 = vld [vmem:[%s1399 + $0x18] sm:$0xff]
    %v1404 = vld [vmem:[%s1399 + $0x20] sm:$0xff]
    %v1405 = vld [vmem:[%s1399 + $0x28] sm:$0xff]
    %v1406 = vld [vmem:[%s1399 + $0x30] sm:$0xff]
    %v1407 = vld [vmem:[%s1399 + $0x38] sm:$0xff]
    %v1408 = vld [vmem:[%s1399 + $0x40] sm:$0xff]
    %v1409 = vld [vmem:[%s1399 + $0x48] sm:$0xff]
    %v1410 = vld [vmem:[%s1399 + $0x50] sm:$0x33]
    %v1411 = vpack.c.bf16 %v1397, %v1396
    %v1412 = vpack.c.bf16 %v1398, %v1398
    %v1424 = vunpack.c.l.b16 %v1400
    %v1425 = vunpack.c.h.b16 %v1400
    %v1426 = vunpack.c.l.b16 %v1401
    %v1427 = vunpack.c.h.b16 %v1401
    %v1428 = vunpack.c.l.b16 %v1402
    %v1429 = vunpack.c.h.b16 %v1402
    %v1430 = vunpack.c.l.b16 %v1403
    %v1431 = vunpack.c.h.b16 %v1403
    %v1432 = vunpack.c.l.b16 %v1404
    %v1433 = vunpack.c.h.b16 %v1404
    %v1434 = vunpack.c.l.b16 %v1405
    %v1435 = vunpack.c.h.b16 %v1405
    %v1436 = vunpack.c.l.b16 %v1406
    %v1437 = vunpack.c.h.b16 %v1406
    %v1438 = vunpack.c.l.b16 %v1407
    %v1439 = vunpack.c.h.b16 %v1407
    %v1440 = vunpack.c.l.b16 %v1408
    %v1441 = vunpack.c.h.b16 %v1408
    %v1442 = vunpack.c.l.b16 %v1409
    %v1443 = vunpack.c.h.b16 %v1409
    %v1444 = vunpack.c.l.b16 %v1410
    %v1445 = vunpack.c.h.b16 %v1410
    %v1446 = vpack.c.b16 %v1426, %v1424
    %v1447 = vpack.c.b16 %v1427, %v1425
    %v1448 = vpack.c.b16 %v1430, %v1428
    %v1449 = vpack.c.b16 %v1431, %v1429
    %v1450 = vpack.c.b16 %v1434, %v1432
    %v1451 = vpack.c.b16 %v1435, %v1433
    %v1452 = vpack.c.b16 %v1438, %v1436
    %v1453 = vpack.c.b16 %v1439, %v1437
    %v1454 = vpack.c.b16 %v1442, %v1440
    %v1455 = vpack.c.b16 %v1443, %v1441
    %v1456 = vpack.c.b16 %v1444, %v1444
    %v1457 = vpack.c.b16 %v1445, %v1445
    %v1469 = vsel %vm979, %v1411, 0
    %v1472 = vsel %vm979, %v1412, 0
    %v1475 = vsel %vm1079, %v1456, 0
    %v1478 = vsel %vm1079, %v1457, 0
    %1480 = vmatprep.subr.bf16.mxu0 0
    %1481 = vmatpush1.bf16.msra.mxu0 0
    %1482 = vmatprep.subr.bf16.mxu0 0
    %1483 = vmatpush1.bf16.msra.mxu0 0
    %1484 = vmatprep.subr.bf16.mxu0 %v1478
    %1485 = vmatpush1.bf16.msra.mxu0 %v1475
    %1486 = vmatprep.subr.bf16.mxu0 %v1455
    %1487 = vmatpush1.bf16.msra.mxu0 %v1454
    %1488 = vmatprep.subr.bf16.mxu0 %v1453
    %1489 = vmatpush1.bf16.msra.mxu0 %v1452
    %1490 = vmatprep.subr.bf16.mxu0 %v1451
    %1491 = vmatpush1.bf16.msra.mxu0 %v1450
    %1492 = vmatprep.subr.bf16.mxu0 %v1449
    %1493 = vmatpush1.bf16.msra.mxu0 %v1448
    %1494 = vmatprep.subr.bf16.mxu0 %v1447
    %1495 = vmatpush1.bf16.msra.mxu0 %v1446
    %1496 = vmatprep.subr.bf16.mxu0 0
    %1497 = vmatpush2.bf16.msra.mxu0 0
    %1498 = vmatprep.subr.bf16.mxu0 0
    %1499 = vmatpush2.bf16.msra.mxu0 0
    %1500 = vmatprep.subr.bf16.mxu0 0
    %1501 = vmatpush2.bf16.msra.mxu0 0
    %1502 = vmatprep.subr.bf16.mxu0 0
    %1503 = vmatpush2.bf16.msra.mxu0 0
    %1504 = vmatprep.subr.bf16.mxu0 0
    %1505 = vmatpush2.bf16.msra.mxu0 0
    %1506 = vmatprep.subr.bf16.mxu0 0
    %1507 = vmatpush2.bf16.msra.mxu0 0
    %1508 = vmatprep.subr.bf16.mxu0 0
    %1509 = vmatpush2.bf16.msra.mxu0 0
    %1510 = vmatprep.subr.bf16.mxu0 0
    %1511 = vmatpush2.bf16.msra.mxu0 0
    %1512 = vmatprep.mubr.bf16.mxu0 0
    %1513 = vmatmul.mubr.bf16.gmra.mxu0 %v1469
    %v1514 = vpop.f32.mrf.mxu0
    %v1515 = vadd.f32 0.0, %v1514
    %v1516 = vpop.f32.mrf.mxu0
    %v1517 = vadd.f32 0.0, %v1516
    %v1518 = vpop.f32.mrf.mxu0
    %v1519 = vadd.f32 0.0, %v1518
    %v1520 = vpop.f32.mrf.mxu0
    %v1521 = vadd.f32 0.0, %v1520
    %1522 = vmatprep.mubr.bf16.mxu0 0
    %1523 = vmatmul.mubr.bf16.gmra.mxu0 %v1472
    %v1524 = vpop.f32.mrf.mxu0
    %v1525 = vadd.f32 0.0, %v1524
    %v1526 = vpop.f32.mrf.mxu0
    %v1527 = vadd.f32 0.0, %v1526
    %v1528 = vpop.f32.mrf.mxu0
    %v1529 = vpop.f32.mrf.mxu0
    %1530 = vdwg.mxu0
    %v1531 = vadd.f32 %v1390, %v1515
    %v1532 = vadd.f32 %v1391, %v1517
    %v1533 = vadd.f32 %v1392, %v1519
    %v1534 = vadd.f32 %v1393, %v1521
    %v1535 = vadd.f32 %v1394, %v1525
    %v1536 = vadd.f32 %v1395, %v1527
    %v1537 = vld [vmem:[#allocation2 + $0x8] sm:$0xff]
    %v1538 = vld [vmem:[#allocation2 + $0x10] sm:$0xff]
    %v1539 = vld [vmem:[#allocation2 + $0x18] sm:$0xf]
    %s1540 = scalar_lea.vmem %s5, 352
    %v1541 = vld [vmem:[%s1540] sm:$0xff]
    %v1542 = vld [vmem:[%s1540 + $0x8] sm:$0xff]
    %v1543 = vld [vmem:[%s1540 + $0x10] sm:$0xff]
    %v1544 = vld [vmem:[%s1540 + $0x18] sm:$0xff]
    %v1545 = vld [vmem:[%s1540 + $0x20] sm:$0xff]
    %v1546 = vld [vmem:[%s1540 + $0x28] sm:$0xff]
    %v1547 = vld [vmem:[%s1540 + $0x30] sm:$0xff]
    %v1548 = vld [vmem:[%s1540 + $0x38] sm:$0xff]
    %v1549 = vld [vmem:[%s1540 + $0x40] sm:$0xff]
    %v1550 = vld [vmem:[%s1540 + $0x48] sm:$0xff]
    %v1551 = vld [vmem:[%s1540 + $0x50] sm:$0x33]
    %v1552 = vpack.c.bf16 %v1538, %v1537
    %v1553 = vpack.c.bf16 %v1539, %v1539
    %v1565 = vunpack.c.l.b16 %v1541
    %v1566 = vunpack.c.h.b16 %v1541
    %v1567 = vunpack.c.l.b16 %v1542
    %v1568 = vunpack.c.h.b16 %v1542
    %v1569 = vunpack.c.l.b16 %v1543
    %v1570 = vunpack.c.h.b16 %v1543
    %v1571 = vunpack.c.l.b16 %v1544
    %v1572 = vunpack.c.h.b16 %v1544
    %v1573 = vunpack.c.l.b16 %v1545
    %v1574 = vunpack.c.h.b16 %v1545
    %v1575 = vunpack.c.l.b16 %v1546
    %v1576 = vunpack.c.h.b16 %v1546
    %v1577 = vunpack.c.l.b16 %v1547
    %v1578 = vunpack.c.h.b16 %v1547
    %v1579 = vunpack.c.l.b16 %v1548
    %v1580 = vunpack.c.h.b16 %v1548
    %v1581 = vunpack.c.l.b16 %v1549
    %v1582 = vunpack.c.h.b16 %v1549
    %v1583 = vunpack.c.l.b16 %v1550
    %v1584 = vunpack.c.h.b16 %v1550
    %v1585 = vunpack.c.l.b16 %v1551
    %v1586 = vunpack.c.h.b16 %v1551
    %v1587 = vpack.c.b16 %v1567, %v1565
    %v1588 = vpack.c.b16 %v1568, %v1566
    %v1589 = vpack.c.b16 %v1571, %v1569
    %v1590 = vpack.c.b16 %v1572, %v1570
    %v1591 = vpack.c.b16 %v1575, %v1573
    %v1592 = vpack.c.b16 %v1576, %v1574
    %v1593 = vpack.c.b16 %v1579, %v1577
    %v1594 = vpack.c.b16 %v1580, %v1578
    %v1595 = vpack.c.b16 %v1583, %v1581
    %v1596 = vpack.c.b16 %v1584, %v1582
    %v1597 = vpack.c.b16 %v1585, %v1585
    %v1598 = vpack.c.b16 %v1586, %v1586
    %v1610 = vsel %vm979, %v1552, 0
    %v1613 = vsel %vm979, %v1553, 0
    %v1616 = vsel %vm1079, %v1597, 0
    %v1619 = vsel %vm1079, %v1598, 0
    %1621 = vmatprep.subr.bf16.mxu0 0
    %1622 = vmatpush1.bf16.msra.mxu0 0
    %1623 = vmatprep.subr.bf16.mxu0 0
    %1624 = vmatpush1.bf16.msra.mxu0 0
    %1625 = vmatprep.subr.bf16.mxu0 %v1619
    %1626 = vmatpush1.bf16.msra.mxu0 %v1616
    %1627 = vmatprep.subr.bf16.mxu0 %v1596
    %1628 = vmatpush1.bf16.msra.mxu0 %v1595
    %1629 = vmatprep.subr.bf16.mxu0 %v1594
    %1630 = vmatpush1.bf16.msra.mxu0 %v1593
    %1631 = vmatprep.subr.bf16.mxu0 %v1592
    %1632 = vmatpush1.bf16.msra.mxu0 %v1591
    %1633 = vmatprep.subr.bf16.mxu0 %v1590
    %1634 = vmatpush1.bf16.msra.mxu0 %v1589
    %1635 = vmatprep.subr.bf16.mxu0 %v1588
    %1636 = vmatpush1.bf16.msra.mxu0 %v1587
    %1637 = vmatprep.subr.bf16.mxu0 0
    %1638 = vmatpush2.bf16.msra.mxu0 0
    %1639 = vmatprep.subr.bf16.mxu0 0
    %1640 = vmatpush2.bf16.msra.mxu0 0
    %1641 = vmatprep.subr.bf16.mxu0 0
    %1642 = vmatpush2.bf16.msra.mxu0 0
    %1643 = vmatprep.subr.bf16.mxu0 0
    %1644 = vmatpush2.bf16.msra.mxu0 0
    %1645 = vmatprep.subr.bf16.mxu0 0
    %1646 = vmatpush2.bf16.msra.mxu0 0
    %1647 = vmatprep.subr.bf16.mxu0 0
    %1648 = vmatpush2.bf16.msra.mxu0 0
    %1649 = vmatprep.subr.bf16.mxu0 0
    %1650 = vmatpush2.bf16.msra.mxu0 0
    %1651 = vmatprep.subr.bf16.mxu0 0
    %1652 = vmatpush2.bf16.msra.mxu0 0
    %1653 = vmatprep.mubr.bf16.mxu0 0
    %1654 = vmatmul.mubr.bf16.gmra.mxu0 %v1610
    %v1655 = vpop.f32.mrf.mxu0
    %v1656 = vadd.f32 0.0, %v1655
    %v1657 = vpop.f32.mrf.mxu0
    %v1658 = vadd.f32 0.0, %v1657
    %v1659 = vpop.f32.mrf.mxu0
    %v1660 = vadd.f32 0.0, %v1659
    %v1661 = vpop.f32.mrf.mxu0
    %v1662 = vadd.f32 0.0, %v1661
    %1663 = vmatprep.mubr.bf16.mxu0 0
    %1664 = vmatmul.mubr.bf16.gmra.mxu0 %v1613
    %v1665 = vpop.f32.mrf.mxu0
    %v1666 = vadd.f32 0.0, %v1665
    %v1667 = vpop.f32.mrf.mxu0
    %v1668 = vadd.f32 0.0, %v1667
    %v1669 = vpop.f32.mrf.mxu0
    %v1670 = vpop.f32.mrf.mxu0
    %1671 = vdwg.mxu0
    %v1672 = vadd.f32 %v1531, %v1656
    %v1673 = vadd.f32 %v1532, %v1658
    %v1674 = vadd.f32 %v1533, %v1660
    %v1675 = vadd.f32 %v1534, %v1662
    %v1676 = vadd.f32 %v1535, %v1666
    %v1677 = vadd.f32 %v1536, %v1668
    %v1678 = vld [vmem:[%s6] sm:$0x3]
    %v1680 = vlaneseq
    %v1681 = vshrl.u32 %v1680, 7
    %v1682 = vsub.s32 0, %v1681
    %v1683 = vrot.slane %v1678, %v1682
    %v1684 = vlaneseq
    %v1685 = vshrl.u32 %v1684, 7
    %v1686 = vsub.s32 1, %v1685
    %v1687 = vrot.slane %v1678, %v1686
    %v1690 = vadd.f32 %v1672, %v1683
    %v1691 = vadd.f32 %v1673, %v1687
    %v1692 = vadd.f32 %v1674, %v1683
    %v1693 = vadd.f32 %v1675, %v1687
    %v1694 = vadd.f32 %v1676, %v1683
    %v1695 = vadd.f32 %v1677, %v1687
    %v1696 = vld [vmem:[%s7] sm:$0xf]
    %v1697 = vld [vmem:[%s7 + $0x4] sm:$0x1]
    %v1698 = vld [vmem:[%s8] sm:$0xf]
    %v1699 = vld [vmem:[%s8 + $0x4] sm:$0xf]
    %v1700 = vld [vmem:[%s8 + $0x8] sm:$0xf]
    %v1701 = vld [vmem:[%s8 + $0xc] sm:$0xf]
    %v1702 = vld [vmem:[%s8 + $0x10] sm:$0xf]
    %v1703 = vld [vmem:[%s8 + $0x14] sm:$0xf]
    %v1704 = vld [vmem:[%s8 + $0x18] sm:$0xf]
    %v1705 = vld [vmem:[%s8 + $0x1c] sm:$0xf]
    %v1706 = vld [vmem:[%s8 + $0x20] sm:$0xf]
    %v1707 = vld [vmem:[%s8 + $0x24] sm:$0xf]
    %v1708 = vld [vmem:[%s8 + $0x28] sm:$0xf]
    %v1709 = vld [vmem:[%s8 + $0x2c] sm:$0xf]
    %v1710 = vld [vmem:[%s8 + $0x30] sm:$0xf]
    %v1711 = vld [vmem:[%s8 + $0x34] sm:$0xf]
    %v1712 = vld [vmem:[%s8 + $0x38] sm:$0xf]
    %v1713 = vld [vmem:[%s8 + $0x3c] sm:$0xf]
    %v1714 = vld [vmem:[%s8 + $0x40] sm:$0xf]
    %v1715 = vld [vmem:[%s8 + $0x44] sm:$0xf]
    %v1716 = vld [vmem:[%s8 + $0x48] sm:$0xf]
    %v1717 = vld [vmem:[%s8 + $0x4c] sm:$0xf]
    %v1718 = vpack.c.bf16 %v1692, %v1690
    %v1719 = vpack.c.bf16 %v1693, %v1691
    %v1720 = vpack.c.bf16 %v1694, %v1694
    %v1721 = vpack.c.bf16 %v1695, %v1695
    %v1742 = vunpack.c.l.b16 %v1698
    %v1743 = vunpack.c.l.b16 %v1699
    %v1744 = vunpack.c.l.b16 %v1700
    %v1745 = vunpack.c.l.b16 %v1701
    %v1746 = vunpack.c.l.b16 %v1702
    %v1747 = vunpack.c.l.b16 %v1703
    %v1748 = vunpack.c.l.b16 %v1704
    %v1749 = vunpack.c.l.b16 %v1705
    %v1750 = vunpack.c.l.b16 %v1706
    %v1751 = vunpack.c.l.b16 %v1707
    %v1752 = vunpack.c.l.b16 %v1708
    %v1753 = vunpack.c.l.b16 %v1709
    %v1754 = vunpack.c.l.b16 %v1710
    %v1755 = vunpack.c.l.b16 %v1711
    %v1756 = vunpack.c.l.b16 %v1712
    %v1757 = vunpack.c.l.b16 %v1713
    %v1758 = vunpack.c.l.b16 %v1714
    %v1759 = vunpack.c.l.b16 %v1715
    %v1760 = vunpack.c.l.b16 %v1716
    %v1761 = vunpack.c.l.b16 %v1717
    %v1762 = vpack.c.b16 %v1743, %v1742
    %v1763 = vpack.c.b16 %v1745, %v1744
    %v1764 = vpack.c.b16 %v1747, %v1746
    %v1765 = vpack.c.b16 %v1749, %v1748
    %v1766 = vpack.c.b16 %v1751, %v1750
    %v1767 = vpack.c.b16 %v1753, %v1752
    %v1768 = vpack.c.b16 %v1755, %v1754
    %v1769 = vpack.c.b16 %v1757, %v1756
    %v1770 = vpack.c.b16 %v1759, %v1758
    %v1771 = vpack.c.b16 %v1761, %v1760
    %v1783 = vsel %vm97, %v1719, 0
    %v1786 = vsel %vm97, %v1721, 0
    %1788 = vmatprep.subr.bf16.mxu0 0
    %1789 = vmatpush1.bf16.msra.mxu0 %v1769
    %1790 = vmatprep.subr.bf16.mxu0 0
    %1791 = vmatpush1.bf16.msra.mxu0 %v1768
    %1792 = vmatprep.subr.bf16.mxu0 0
    %1793 = vmatpush1.bf16.msra.mxu0 %v1767
    %1794 = vmatprep.subr.bf16.mxu0 0
    %1795 = vmatpush1.bf16.msra.mxu0 %v1766
    %1796 = vmatprep.subr.bf16.mxu0 0
    %1797 = vmatpush1.bf16.msra.mxu0 %v1765
    %1798 = vmatprep.subr.bf16.mxu0 0
    %1799 = vmatpush1.bf16.msra.mxu0 %v1764
    %1800 = vmatprep.subr.bf16.mxu0 0
    %1801 = vmatpush1.bf16.msra.mxu0 %v1763
    %1802 = vmatprep.subr.bf16.mxu0 0
    %1803 = vmatpush1.bf16.msra.mxu0 %v1762
    %1804 = vmatprep.subr.bf16.mxu0 0
    %1805 = vmatpush2.bf16.msra.mxu0 0
    %1806 = vmatprep.subr.bf16.mxu0 0
    %1807 = vmatpush2.bf16.msra.mxu0 0
    %1808 = vmatprep.subr.bf16.mxu0 0
    %1809 = vmatpush2.bf16.msra.mxu0 0
    %1810 = vmatprep.subr.bf16.mxu0 0
    %1811 = vmatpush2.bf16.msra.mxu0 0
    %1812 = vmatprep.subr.bf16.mxu0 0
    %1813 = vmatpush2.bf16.msra.mxu0 0
    %1814 = vmatprep.subr.bf16.mxu0 0
    %1815 = vmatpush2.bf16.msra.mxu0 0
    %1816 = vmatprep.subr.bf16.mxu0 0
    %1817 = vmatpush2.bf16.msra.mxu0 %v1771
    %1818 = vmatprep.subr.bf16.mxu0 0
    %1819 = vmatpush2.bf16.msra.mxu0 %v1770
    %1820 = vmatprep.mubr.bf16.mxu0 %v1783
    %1821 = vmatmul.mubr.bf16.gmra.mxu0 %v1718
    %v1822 = vpop.f32.mrf.mxu0
    %v1823 = vadd.f32 0.0, %v1822
    %v1824 = vpop.f32.mrf.mxu0
    %v1825 = vpop.f32.mrf.mxu0
    %v1826 = vadd.f32 0.0, %v1825
    %v1827 = vpop.f32.mrf.mxu0
    %1828 = vmatprep.mubr.bf16.mxu0 %v1786
    %1829 = vmatmul.mubr.bf16.gmra.mxu0 %v1720
    %v1830 = vpop.f32.mrf.mxu0
    %v1831 = vadd.f32 0.0, %v1830
    %v1832 = vpop.f32.mrf.mxu0
    %v1833 = vpop.f32.mrf.mxu0
    %v1834 = vpop.f32.mrf.mxu0
    %1835 = vdwg.mxu0
    %v1836 = vpack.c.bf16 %v1826, %v1823
    %v1837 = vpack.c.bf16 %v1831, %v1831
    %v1840 = vunpack.c.l.b16 %v1696
    %v1841 = vunpack.c.l.b16 %v1697
    %v1842 = vpack.c.b16 %v1841, %v1840
    %vm1843 = vcmask 162816
    %v1845 = vsel %vm1843, %v1842, 0
    %v1848 = vsel %vm1079, %v1837, 0
    %1850 = vmatprep.subr.bf16.mxu0 0
    %1851 = vmatpush1.bf16.msra.mxu0 0
    %1852 = vmatprep.subr.bf16.mxu0 0
    %1853 = vmatpush1.bf16.msra.mxu0 0
    %1854 = vmatprep.subr.bf16.mxu0 0
    %1855 = vmatpush1.bf16.msra.mxu0 0
    %1856 = vmatprep.subr.bf16.mxu0 0
    %1857 = vmatpush1.bf16.msra.mxu0 0
    %1858 = vmatprep.subr.bf16.mxu0 0
    %1859 = vmatpush1.bf16.msra.mxu0 0
    %1860 = vmatprep.subr.bf16.mxu0 0
    %1861 = vmatpush1.bf16.msra.mxu0 0
    %1862 = vmatprep.subr.bf16.mxu0 0
    %1863 = vmatpush1.bf16.msra.mxu0 %v1848
    %1864 = vmatprep.subr.bf16.mxu0 0
    %1865 = vmatpush1.bf16.msra.mxu0 %v1836
    %1866 = vmatprep.subr.bf16.mxu0 0
    %1867 = vmatpush2.bf16.msra.mxu0 0
    %1868 = vmatprep.subr.bf16.mxu0 0
    %1869 = vmatpush2.bf16.msra.mxu0 0
    %1870 = vmatprep.subr.bf16.mxu0 0
    %1871 = vmatpush2.bf16.msra.mxu0 0
    %1872 = vmatprep.subr.bf16.mxu0 0
    %1873 = vmatpush2.bf16.msra.mxu0 0
    %1874 = vmatprep.subr.bf16.mxu0 0
    %1875 = vmatpush2.bf16.msra.mxu0 0
    %1876 = vmatprep.subr.bf16.mxu0 0
    %1877 = vmatpush2.bf16.msra.mxu0 0
    %1878 = vmatprep.subr.bf16.mxu0 0
    %1879 = vmatpush2.bf16.msra.mxu0 0
    %1880 = vmatprep.subr.bf16.mxu0 0
    %1881 = vmatpush2.bf16.msra.mxu0 0
    %1882 = vmatprep.mubr.bf16.mxu0 0
    %1883 = vmatmul.mubr.bf16.gmra.mxu0 %v1845
    %v1884 = vpop.f32.mrf.mxu0
    %v1885 = vadd.f32 0.0, %v1884
    %v1886 = vpop.f32.mrf.mxu0
    %v1887 = vpop.f32.mrf.mxu0
    %v1888 = vadd.f32 0.0, %v1887
    %v1889 = vpop.f32.mrf.mxu0
    %1890 = vdwg.mxu0
    %vm1891 = vcmask 654336
    %1892 = vst.msk [vmem:[#allocation3] sm:$0xff] %vm1891, %v1885
    %vm1893 = vcmask 648192
    %1894 = vst.msk [vmem:[#allocation3 + $0x8] sm:$0x3] %vm1893, %v1888
    %v1895 = vld [vmem:[#allocation3] sm:$0x3]
    %v1896 = vld [vmem:[%s9] sm:$0xf]
    %v1897 = vld [vmem:[%s9 + $0x4] sm:$0xf]
    %v1898 = vld [vmem:[%s9 + $0x8] sm:$0xf]
    %v1899 = vld [vmem:[%s9 + $0xc] sm:$0xf]
    %v1900 = vld [vmem:[%s9 + $0x10] sm:$0xf]
    %v1901 = vld [vmem:[%s9 + $0x14] sm:$0xf]
    %v1902 = vld [vmem:[%s9 + $0x18] sm:$0xf]
    %v1903 = vld [vmem:[%s9 + $0x1c] sm:$0xf]
    %v1904 = vld [vmem:[%s9 + $0x20] sm:$0xf]
    %v1905 = vld [vmem:[%s9 + $0x24] sm:$0xf]
    %v1906 = vpack.c.bf16 %v1895, %v1895
    %v1907 = vld [vmem:[#allocation3 + $0x2] sm:$0x3]
    %s1908 = scalar_lea.vmem %s9, 40
    %v1909 = vld [vmem:[%s1908] sm:$0xf]
    %v1910 = vld [vmem:[%s1908 + $0x4] sm:$0xf]
    %v1911 = vld [vmem:[%s1908 + $0x8] sm:$0xf]
    %v1912 = vld [vmem:[%s1908 + $0xc] sm:$0xf]
    %v1913 = vld [vmem:[%s1908 + $0x10] sm:$0xf]
    %v1914 = vld [vmem:[%s1908 + $0x14] sm:$0xf]
    %v1915 = vld [vmem:[%s1908 + $0x18] sm:$0xf]
    %v1916 = vld [vmem:[%s1908 + $0x1c] sm:$0xf]
    %v1917 = vld [vmem:[%s1908 + $0x20] sm:$0xf]
    %v1918 = vld [vmem:[%s1908 + $0x24] sm:$0xf]
    %v1919 = vpack.c.bf16 %v1907, %v1907
    %v1930 = vunpack.c.l.b16 %v1909
    %v1931 = vunpack.c.l.b16 %v1910
    %v1932 = vunpack.c.l.b16 %v1911
    %v1933 = vunpack.c.l.b16 %v1912
    %v1934 = vunpack.c.l.b16 %v1913
    %v1935 = vunpack.c.l.b16 %v1914
    %v1936 = vunpack.c.l.b16 %v1915
    %v1937 = vunpack.c.l.b16 %v1916
    %v1938 = vunpack.c.l.b16 %v1917
    %v1939 = vunpack.c.l.b16 %v1918
    %v1940 = vpack.c.b16 %v1931, %v1930
    %v1941 = vpack.c.b16 %v1933, %v1932
    %v1942 = vpack.c.b16 %v1935, %v1934
    %v1943 = vpack.c.b16 %v1937, %v1936
    %v1944 = vpack.c.b16 %v1939, %v1938
    %v1951 = vsel %vm1891, %v1919, 0
    %1953 = vmatprep.subr.bf16.mxu0 0
    %1954 = vmatpush1.bf16.msra.mxu0 0
    %1955 = vmatprep.subr.bf16.mxu0 0
    %1956 = vmatpush1.bf16.msra.mxu0 0
    %1957 = vmatprep.subr.bf16.mxu0 0
    %1958 = vmatpush1.bf16.msra.mxu0 0
    %1959 = vmatprep.subr.bf16.mxu0 0
    %1960 = vmatpush1.bf16.msra.mxu0 %v1944
    %1961 = vmatprep.subr.bf16.mxu0 0
    %1962 = vmatpush1.bf16.msra.mxu0 %v1943
    %1963 = vmatprep.subr.bf16.mxu0 0
    %1964 = vmatpush1.bf16.msra.mxu0 %v1942
    %1965 = vmatprep.subr.bf16.mxu0 0
    %1966 = vmatpush1.bf16.msra.mxu0 %v1941
    %1967 = vmatprep.subr.bf16.mxu0 0
    %1968 = vmatpush1.bf16.msra.mxu0 %v1940
    %1969 = vmatprep.subr.bf16.mxu0 0
    %1970 = vmatpush2.bf16.msra.mxu0 0
    %1971 = vmatprep.subr.bf16.mxu0 0
    %1972 = vmatpush2.bf16.msra.mxu0 0
    %1973 = vmatprep.subr.bf16.mxu0 0
    %1974 = vmatpush2.bf16.msra.mxu0 0
    %1975 = vmatprep.subr.bf16.mxu0 0
    %1976 = vmatpush2.bf16.msra.mxu0 0
    %1977 = vmatprep.subr.bf16.mxu0 0
    %1978 = vmatpush2.bf16.msra.mxu0 0
    %1979 = vmatprep.subr.bf16.mxu0 0
    %1980 = vmatpush2.bf16.msra.mxu0 0
    %1981 = vmatprep.subr.bf16.mxu0 0
    %1982 = vmatpush2.bf16.msra.mxu0 0
    %1983 = vmatprep.subr.bf16.mxu0 0
    %1984 = vmatpush2.bf16.msra.mxu0 0
    %1985 = vmatprep.mubr.bf16.mxu0 0
    %1986 = vmatmul.mubr.bf16.gmra.mxu0 %v1951
    %v1987 = vpop.f32.mrf.mxu0
    %v1988 = vadd.f32 0.0, %v1987
    %v1989 = vpop.f32.mrf.mxu0
    %v1990 = vpop.f32.mrf.mxu0
    %v1991 = vpop.f32.mrf.mxu0
    %1992 = vdwg.mxu0
    %v2003 = vunpack.c.l.b16 %v1896
    %v2004 = vunpack.c.l.b16 %v1897
    %v2005 = vunpack.c.l.b16 %v1898
    %v2006 = vunpack.c.l.b16 %v1899
    %v2007 = vunpack.c.l.b16 %v1900
    %v2008 = vunpack.c.l.b16 %v1901
    %v2009 = vunpack.c.l.b16 %v1902
    %v2010 = vunpack.c.l.b16 %v1903
    %v2011 = vunpack.c.l.b16 %v1904
    %v2012 = vunpack.c.l.b16 %v1905
    %v2013 = vpack.c.b16 %v2004, %v2003
    %v2014 = vpack.c.b16 %v2006, %v2005
    %v2015 = vpack.c.b16 %v2008, %v2007
    %v2016 = vpack.c.b16 %v2010, %v2009
    %v2017 = vpack.c.b16 %v2012, %v2011
    %v2024 = vsel %vm1891, %v1906, 0
    %2026 = vmatprep.subr.bf16.mxu0 0
    %2027 = vmatpush1.bf16.msra.mxu0 0
    %2028 = vmatprep.subr.bf16.mxu0 0
    %2029 = vmatpush1.bf16.msra.mxu0 0
    %2030 = vmatprep.subr.bf16.mxu0 0
    %2031 = vmatpush1.bf16.msra.mxu0 0
    %2032 = vmatprep.subr.bf16.mxu0 0
    %2033 = vmatpush1.bf16.msra.mxu0 %v2017
    %2034 = vmatprep.subr.bf16.mxu0 0
    %2035 = vmatpush1.bf16.msra.mxu0 %v2016
    %2036 = vmatprep.subr.bf16.mxu0 0
    %2037 = vmatpush1.bf16.msra.mxu0 %v2015
    %2038 = vmatprep.subr.bf16.mxu0 0
    %2039 = vmatpush1.bf16.msra.mxu0 %v2014
    %2040 = vmatprep.subr.bf16.mxu0 0
    %2041 = vmatpush1.bf16.msra.mxu0 %v2013
    %2042 = vmatprep.subr.bf16.mxu0 0
    %2043 = vmatpush2.bf16.msra.mxu0 0
    %2044 = vmatprep.subr.bf16.mxu0 0
    %2045 = vmatpush2.bf16.msra.mxu0 0
    %2046 = vmatprep.subr.bf16.mxu0 0
    %2047 = vmatpush2.bf16.msra.mxu0 0
    %2048 = vmatprep.subr.bf16.mxu0 0
    %2049 = vmatpush2.bf16.msra.mxu0 0
    %2050 = vmatprep.subr.bf16.mxu0 0
    %2051 = vmatpush2.bf16.msra.mxu0 0
    %2052 = vmatprep.subr.bf16.mxu0 0
    %2053 = vmatpush2.bf16.msra.mxu0 0
    %2054 = vmatprep.subr.bf16.mxu0 0
    %2055 = vmatpush2.bf16.msra.mxu0 0
    %2056 = vmatprep.subr.bf16.mxu0 0
    %2057 = vmatpush2.bf16.msra.mxu0 0
    %2058 = vmatprep.mubr.bf16.mxu0 0
    %2059 = vmatmul.mubr.bf16.gmra.mxu0 %v2024
    %v2060 = vpop.f32.mrf.mxu0
    %v2061 = vadd.f32 %v1988, %v2060
    %v2062 = vpop.f32.mrf.mxu0
    %v2063 = vpop.f32.mrf.mxu0
    %v2064 = vpop.f32.mrf.mxu0
    %2065 = vdwg.mxu0
    %v2066 = vld [vmem:[#allocation3 + $0x4] sm:$0x3]
    %s2067 = scalar_lea.vmem %s9, 80
    %v2068 = vld [vmem:[%s2067] sm:$0xf]
    %v2069 = vld [vmem:[%s2067 + $0x4] sm:$0xf]
    %v2070 = vld [vmem:[%s2067 + $0x8] sm:$0xf]
    %v2071 = vld [vmem:[%s2067 + $0xc] sm:$0xf]
    %v2072 = vld [vmem:[%s2067 + $0x10] sm:$0xf]
    %v2073 = vld [vmem:[%s2067 + $0x14] sm:$0xf]
    %v2074 = vld [vmem:[%s2067 + $0x18] sm:$0xf]
    %v2075 = vld [vmem:[%s2067 + $0x1c] sm:$0xf]
    %v2076 = vld [vmem:[%s2067 + $0x20] sm:$0xf]
    %v2077 = vld [vmem:[%s2067 + $0x24] sm:$0xf]
    %v2078 = vpack.c.bf16 %v2066, %v2066
    %v2089 = vunpack.c.l.b16 %v2068
    %v2090 = vunpack.c.l.b16 %v2069
    %v2091 = vunpack.c.l.b16 %v2070
    %v2092 = vunpack.c.l.b16 %v2071
    %v2093 = vunpack.c.l.b16 %v2072
    %v2094 = vunpack.c.l.b16 %v2073
    %v2095 = vunpack.c.l.b16 %v2074
    %v2096 = vunpack.c.l.b16 %v2075
    %v2097 = vunpack.c.l.b16 %v2076
    %v2098 = vunpack.c.l.b16 %v2077
    %v2099 = vpack.c.b16 %v2090, %v2089
    %v2100 = vpack.c.b16 %v2092, %v2091
    %v2101 = vpack.c.b16 %v2094, %v2093
    %v2102 = vpack.c.b16 %v2096, %v2095
    %v2103 = vpack.c.b16 %v2098, %v2097
    %v2110 = vsel %vm1891, %v2078, 0
    %2112 = vmatprep.subr.bf16.mxu0 0
    %2113 = vmatpush1.bf16.msra.mxu0 0
    %2114 = vmatprep.subr.bf16.mxu0 0
    %2115 = vmatpush1.bf16.msra.mxu0 0
    %2116 = vmatprep.subr.bf16.mxu0 0
    %2117 = vmatpush1.bf16.msra.mxu0 0
    %2118 = vmatprep.subr.bf16.mxu0 0
    %2119 = vmatpush1.bf16.msra.mxu0 %v2103
    %2120 = vmatprep.subr.bf16.mxu0 0
    %2121 = vmatpush1.bf16.msra.mxu0 %v2102
    %2122 = vmatprep.subr.bf16.mxu0 0
    %2123 = vmatpush1.bf16.msra.mxu0 %v2101
    %2124 = vmatprep.subr.bf16.mxu0 0
    %2125 = vmatpush1.bf16.msra.mxu0 %v2100
    %2126 = vmatprep.subr.bf16.mxu0 0
    %2127 = vmatpush1.bf16.msra.mxu0 %v2099
    %2128 = vmatprep.subr.bf16.mxu0 0
    %2129 = vmatpush2.bf16.msra.mxu0 0
    %2130 = vmatprep.subr.bf16.mxu0 0
    %2131 = vmatpush2.bf16.msra.mxu0 0
    %2132 = vmatprep.subr.bf16.mxu0 0
    %2133 = vmatpush2.bf16.msra.mxu0 0
    %2134 = vmatprep.subr.bf16.mxu0 0
    %2135 = vmatpush2.bf16.msra.mxu0 0
    %2136 = vmatprep.subr.bf16.mxu0 0
    %2137 = vmatpush2.bf16.msra.mxu0 0
    %2138 = vmatprep.subr.bf16.mxu0 0
    %2139 = vmatpush2.bf16.msra.mxu0 0
    %2140 = vmatprep.subr.bf16.mxu0 0
    %2141 = vmatpush2.bf16.msra.mxu0 0
    %2142 = vmatprep.subr.bf16.mxu0 0
    %2143 = vmatpush2.bf16.msra.mxu0 0
    %2144 = vmatprep.mubr.bf16.mxu0 0
    %2145 = vmatmul.mubr.bf16.gmra.mxu0 %v2110
    %v2146 = vpop.f32.mrf.mxu0
    %v2147 = vadd.f32 0.0, %v2146
    %v2148 = vpop.f32.mrf.mxu0
    %v2149 = vpop.f32.mrf.mxu0
    %v2150 = vpop.f32.mrf.mxu0
    %2151 = vdwg.mxu0
    %v2152 = vadd.f32 %v2061, %v2147
    %v2153 = vld [vmem:[#allocation3 + $0x6] sm:$0x3]
    %s2154 = scalar_lea.vmem %s9, 120
    %v2155 = vld [vmem:[%s2154] sm:$0xf]
    %v2156 = vld [vmem:[%s2154 + $0x4] sm:$0xf]
    %v2157 = vld [vmem:[%s2154 + $0x8] sm:$0xf]
    %v2158 = vld [vmem:[%s2154 + $0xc] sm:$0xf]
    %v2159 = vld [vmem:[%s2154 + $0x10] sm:$0xf]
    %v2160 = vld [vmem:[%s2154 + $0x14] sm:$0xf]
    %v2161 = vld [vmem:[%s2154 + $0x18] sm:$0xf]
    %v2162 = vld [vmem:[%s2154 + $0x1c] sm:$0xf]
    %v2163 = vld [vmem:[%s2154 + $0x20] sm:$0xf]
    %v2164 = vld [vmem:[%s2154 + $0x24] sm:$0xf]
    %v2165 = vpack.c.bf16 %v2153, %v2153
    %v2176 = vunpack.c.l.b16 %v2155
    %v2177 = vunpack.c.l.b16 %v2156
    %v2178 = vunpack.c.l.b16 %v2157
    %v2179 = vunpack.c.l.b16 %v2158
    %v2180 = vunpack.c.l.b16 %v2159
    %v2181 = vunpack.c.l.b16 %v2160
    %v2182 = vunpack.c.l.b16 %v2161
    %v2183 = vunpack.c.l.b16 %v2162
    %v2184 = vunpack.c.l.b16 %v2163
    %v2185 = vunpack.c.l.b16 %v2164
    %v2186 = vpack.c.b16 %v2177, %v2176
    %v2187 = vpack.c.b16 %v2179, %v2178
    %v2188 = vpack.c.b16 %v2181, %v2180
    %v2189 = vpack.c.b16 %v2183, %v2182
    %v2190 = vpack.c.b16 %v2185, %v2184
    %v2197 = vsel %vm1891, %v2165, 0
    %2199 = vmatprep.subr.bf16.mxu0 0
    %2200 = vmatpush1.bf16.msra.mxu0 0
    %2201 = vmatprep.subr.bf16.mxu0 0
    %2202 = vmatpush1.bf16.msra.mxu0 0
    %2203 = vmatprep.subr.bf16.mxu0 0
    %2204 = vmatpush1.bf16.msra.mxu0 0
    %2205 = vmatprep.subr.bf16.mxu0 0
    %2206 = vmatpush1.bf16.msra.mxu0 %v2190
    %2207 = vmatprep.subr.bf16.mxu0 0
    %2208 = vmatpush1.bf16.msra.mxu0 %v2189
    %2209 = vmatprep.subr.bf16.mxu0 0
    %2210 = vmatpush1.bf16.msra.mxu0 %v2188
    %2211 = vmatprep.subr.bf16.mxu0 0
    %2212 = vmatpush1.bf16.msra.mxu0 %v2187
    %2213 = vmatprep.subr.bf16.mxu0 0
    %2214 = vmatpush1.bf16.msra.mxu0 %v2186
    %2215 = vmatprep.subr.bf16.mxu0 0
    %2216 = vmatpush2.bf16.msra.mxu0 0
    %2217 = vmatprep.subr.bf16.mxu0 0
    %2218 = vmatpush2.bf16.msra.mxu0 0
    %2219 = vmatprep.subr.bf16.mxu0 0
    %2220 = vmatpush2.bf16.msra.mxu0 0
    %2221 = vmatprep.subr.bf16.mxu0 0
    %2222 = vmatpush2.bf16.msra.mxu0 0
    %2223 = vmatprep.subr.bf16.mxu0 0
    %2224 = vmatpush2.bf16.msra.mxu0 0
    %2225 = vmatprep.subr.bf16.mxu0 0
    %2226 = vmatpush2.bf16.msra.mxu0 0
    %2227 = vmatprep.subr.bf16.mxu0 0
    %2228 = vmatpush2.bf16.msra.mxu0 0
    %2229 = vmatprep.subr.bf16.mxu0 0
    %2230 = vmatpush2.bf16.msra.mxu0 0
    %2231 = vmatprep.mubr.bf16.mxu0 0
    %2232 = vmatmul.mubr.bf16.gmra.mxu0 %v2197
    %v2233 = vpop.f32.mrf.mxu0
    %v2234 = vadd.f32 0.0, %v2233
    %v2235 = vpop.f32.mrf.mxu0
    %v2236 = vpop.f32.mrf.mxu0
    %v2237 = vpop.f32.mrf.mxu0
    %2238 = vdwg.mxu0
    %v2239 = vadd.f32 %v2152, %v2234
    %v2240 = vld [vmem:[#allocation3 + $0x8] sm:$0x3]
    %s2241 = scalar_lea.vmem %s9, 160
    %v2242 = vld [vmem:[%s2241] sm:$0xf]
    %v2243 = vld [vmem:[%s2241 + $0x4] sm:$0xf]
    %v2244 = vld [vmem:[%s2241 + $0x8] sm:$0xf]
    %v2245 = vld [vmem:[%s2241 + $0xc] sm:$0xf]
    %v2246 = vld [vmem:[%s2241 + $0x10] sm:$0xf]
    %v2247 = vld [vmem:[%s2241 + $0x14] sm:$0xf]
    %v2248 = vld [vmem:[%s2241 + $0x18] sm:$0xf]
    %v2249 = vld [vmem:[%s2241 + $0x1c] sm:$0xf]
    %v2250 = vld [vmem:[%s2241 + $0x20] sm:$0xf]
    %v2251 = vld [vmem:[%s2241 + $0x24] sm:$0xf]
    %v2252 = vpack.c.bf16 %v2240, %v2240
    %v2263 = vunpack.c.l.b16 %v2242
    %v2264 = vunpack.c.l.b16 %v2243
    %v2265 = vunpack.c.l.b16 %v2244
    %v2266 = vunpack.c.l.b16 %v2245
    %v2267 = vunpack.c.l.b16 %v2246
    %v2268 = vunpack.c.l.b16 %v2247
    %v2269 = vunpack.c.l.b16 %v2248
    %v2270 = vunpack.c.l.b16 %v2249
    %v2271 = vunpack.c.l.b16 %v2250
    %v2272 = vunpack.c.l.b16 %v2251
    %v2273 = vpack.c.b16 %v2264, %v2263
    %v2274 = vpack.c.b16 %v2266, %v2265
    %v2275 = vpack.c.b16 %v2268, %v2267
    %v2276 = vpack.c.b16 %v2270, %v2269
    %v2277 = vpack.c.b16 %v2272, %v2271
    %v2284 = vsel %vm1891, %v2252, 0
    %2286 = vmatprep.subr.bf16.mxu0 0
    %2287 = vmatpush1.bf16.msra.mxu0 0
    %2288 = vmatprep.subr.bf16.mxu0 0
    %2289 = vmatpush1.bf16.msra.mxu0 0
    %2290 = vmatprep.subr.bf16.mxu0 0
    %2291 = vmatpush1.bf16.msra.mxu0 0
    %2292 = vmatprep.subr.bf16.mxu0 0
    %2293 = vmatpush1.bf16.msra.mxu0 %v2277
    %2294 = vmatprep.subr.bf16.mxu0 0
    %2295 = vmatpush1.bf16.msra.mxu0 %v2276
    %2296 = vmatprep.subr.bf16.mxu0 0
    %2297 = vmatpush1.bf16.msra.mxu0 %v2275
    %2298 = vmatprep.subr.bf16.mxu0 0
    %2299 = vmatpush1.bf16.msra.mxu0 %v2274
    %2300 = vmatprep.subr.bf16.mxu0 0
    %2301 = vmatpush1.bf16.msra.mxu0 %v2273
    %2302 = vmatprep.subr.bf16.mxu0 0
    %2303 = vmatpush2.bf16.msra.mxu0 0
    %2304 = vmatprep.subr.bf16.mxu0 0
    %2305 = vmatpush2.bf16.msra.mxu0 0
    %2306 = vmatprep.subr.bf16.mxu0 0
    %2307 = vmatpush2.bf16.msra.mxu0 0
    %2308 = vmatprep.subr.bf16.mxu0 0
    %2309 = vmatpush2.bf16.msra.mxu0 0
    %2310 = vmatprep.subr.bf16.mxu0 0
    %2311 = vmatpush2.bf16.msra.mxu0 0
    %2312 = vmatprep.subr.bf16.mxu0 0
    %2313 = vmatpush2.bf16.msra.mxu0 0
    %2314 = vmatprep.subr.bf16.mxu0 0
    %2315 = vmatpush2.bf16.msra.mxu0 0
    %2316 = vmatprep.subr.bf16.mxu0 0
    %2317 = vmatpush2.bf16.msra.mxu0 0
    %2318 = vmatprep.mubr.bf16.mxu0 0
    %2319 = vmatmul.mubr.bf16.gmra.mxu0 %v2284
    %v2320 = vpop.f32.mrf.mxu0
    %v2321 = vadd.f32 0.0, %v2320
    %v2322 = vpop.f32.mrf.mxu0
    %v2323 = vpop.f32.mrf.mxu0
    %v2324 = vpop.f32.mrf.mxu0
    %2325 = vdwg.mxu0
    %v2326 = vadd.f32 %v2239, %v2321
    %v2327 = vld [vmem:[%s10] sm:$0x1]
    %v2329 = vlaneseq
    %v2330 = vshrl.u32 %v2329, 7
    %v2331 = vsub.s32 0, %v2330
    %v2332 = vrot.slane %v2327, %v2331
    %v2334 = vadd.f32 %v2326, %v2332
    %v2335 = vld [vmem:[%s11] sm:$0xf]
    %v2336 = vld [vmem:[%s11 + $0x4] sm:$0x3]
    %v2337 = vpack.c.bf16 %v2334, %v2334
    %v2338 = vld [vmem:[%s12] sm:$0x1]
    %v2340 = vlaneseq
    %v2341 = vshrl.u32 %v2340, 7
    %v2342 = vsub.s32 0, %v2341
    %v2343 = vrot.slane %v2338, %v2342
    %v2347 = vunpack.c.l.b16 %v2335
    %v2348 = vunpack.c.l.b16 %v2336
    %v2349 = vpack.c.b16 %v2348, %v2347
    %vm2350 = vcmask 97280
    %v2352 = vsel %vm2350, %v2337, 0
    %vm2354 = vcmask 1045504
    %v2356 = vsel %vm2354, %v2349, 0
    %2358 = vmatprep.subr.bf16.mxu0 0
    %2359 = vmatpush1.bf16.msra.mxu0 0
    %2360 = vmatprep.subr.bf16.mxu0 0
    %2361 = vmatpush1.bf16.msra.mxu0 0
    %2362 = vmatprep.subr.bf16.mxu0 0
    %2363 = vmatpush1.bf16.msra.mxu0 0
    %2364 = vmatprep.subr.bf16.mxu0 0
    %2365 = vmatpush1.bf16.msra.mxu0 0
    %2366 = vmatprep.subr.bf16.mxu0 0
    %2367 = vmatpush1.bf16.msra.mxu0 0
    %2368 = vmatprep.subr.bf16.mxu0 0
    %2369 = vmatpush1.bf16.msra.mxu0 0
    %2370 = vmatprep.subr.bf16.mxu0 0
    %2371 = vmatpush1.bf16.msra.mxu0 0
    %2372 = vmatprep.subr.bf16.mxu0 0
    %2373 = vmatpush1.bf16.msra.mxu0 %v2356
    %2374 = vmatprep.subr.bf16.mxu0 0
    %2375 = vmatpush2.bf16.msra.mxu0 0
    %2376 = vmatprep.subr.bf16.mxu0 0
    %2377 = vmatpush2.bf16.msra.mxu0 0
    %2378 = vmatprep.subr.bf16.mxu0 0
    %2379 = vmatpush2.bf16.msra.mxu0 0
    %2380 = vmatprep.subr.bf16.mxu0 0
    %2381 = vmatpush2.bf16.msra.mxu0 0
    %2382 = vmatprep.subr.bf16.mxu0 0
    %2383 = vmatpush2.bf16.msra.mxu0 0
    %2384 = vmatprep.subr.bf16.mxu0 0
    %2385 = vmatpush2.bf16.msra.mxu0 0
    %2386 = vmatprep.subr.bf16.mxu0 0
    %2387 = vmatpush2.bf16.msra.mxu0 0
    %2388 = vmatprep.subr.bf16.mxu0 0
    %2389 = vmatpush2.bf16.msra.mxu0 0
    %2390 = vmatprep.mubr.bf16.mxu0 0
    %2391 = vmatmul.mubr.bf16.gmra.mxu0 %v2352
    %v2392 = vpop.f32.mrf.mxu0
    %v2393 = vadd.f32 %v2343, %v2392
    %v2394 = vpop.f32.mrf.mxu0
    %v2395 = vpop.f32.mrf.mxu0
    %v2396 = vpop.f32.mrf.mxu0
    %2397 = vdwg.mxu0
    %vm2398 = vcmask 74752
    %v2399 = vsel %vm2398, %v2393, -inf
    %2400 = vmax.xlane.f32.xlu0 %v2399
    %v2401 = vpop.xlane.xlu0 %2400
    %v2402 = vsub.f32 %v2393, %v2401
    %v2403 = vmul.f32 %v2402, 1.442695
    %v2404 = vpow.pop %v2403
    %v2405 = vsel %vm2398, %v2404, 0.0
    %2406 = vadd.xlane.f32.xlu0 %v2405
    %v2407 = vpop.xlane.xlu0 %2406
    %v2408 = vlog2.pop %v2407
    %v2409 = vmul.f32 %v2408, 0.6931472
    %v2410 = vsub.f32 %v2402, %v2409
    %2411 = vst.msk [vmem:[#allocation4] sm:$0x3] %vm2398, %v2410
    // Predicated region
    $region54: #{net_forward.1} parent=1 // pred_check
      _
    $region55: #{net_forward.1} parent=1 // pred_check_branch
      %2413 = sbr.rel (0) target = $region57
    $region56: #{net_forward.1} parent=1 // pred_region
      %s2415 = ssub.s32 32, 32
      %2416 = vsyncadd [#allocation5], %s2415
      %s2418 = sshll.u32 [#allocation4], 4
      %s2419 = int_to_ptr.vmem [resolvable:$true] %s2418
      %2421 = dma.vmem_to_hbm [thread:$0]  %s2419, 32, %s13, [#allocation5]
    $region57: #{net_forward.1} parent=1 // pred_fallthru
      _
    // Predicated region
    $region58: #{net_forward.1} parent=1 // pred_check
      _
    $region59: #{net_forward.1} parent=1 // pred_check_branch
      %2423 = sbr.rel (0) target = $region61
    $region60: #{net_forward.1} parent=1 // pred_region
      %2424 = dma.done [#allocation5], 32
    $region61: #{net_forward.1} parent=1 // pred_fallthru
      _
    %2425 = vsyncpa [#allocation5], 1

</llo_original>
